<compile_context>
chip_gen: v5e
topology: v5e:2x2
jax: 0.10.0
libtpu: 0.0.40
codegen_flags: <defaults>
</compile_context>

<pallas_src>
import functools

import jax
import jax.numpy as jnp
from jax import lax
from jax.experimental import pallas as pl
from jax.experimental.pallas import tpu as pltpu


def _gelu_tanh(x):
    # tanh-approximate GELU (EUP-friendly).
    # TODO(synk): PyTorch nn.GELU() default is the exact erf form; the tanh
    # approximation differs by <1e-3.
    c = 0.7978845608028654  # sqrt(2/pi)
    return 0.5 * x * (1.0 + jnp.tanh(c * (x + 0.044715 * x * x * x)))


def _residual_block_kernel(x_ref, w_ref, b_ref, scale_ref, shift_ref, o_ref,
                           xpad_ref, *, K, p, Hs):
    # x_ref    : (1, H, W, Cb)     VMEM   NHWC tile (one image, Cb channels on lanes)
    # w_ref    : (K*K, Cb)         VMEM   depthwise taps as per-lane weight vectors
    # b_ref / scale_ref / shift_ref : (1, Cb)  VMEM
    # o_ref    : (1, H, W, Cb)     VMEM
    # xpad_ref : (H+2p, W+2p, Cb)  VMEM scratch  zero-halo plane ("same" conv)
    H = x_ref.shape[1]
    W = x_ref.shape[2]
    Cb = x_ref.shape[3]

    # --- zero only the p-wide halo (interior is fully overwritten below) ------
    if p > 0:
        zrow = jnp.zeros((p, W + 2 * p, Cb), jnp.float32)
        zcol = jnp.zeros((H, p, Cb), jnp.float32)
        xpad_ref[0:p, :, :] = zrow                       # top halo rows
        xpad_ref[p + H:2 * p + H, :, :] = zrow           # bottom halo rows
        xpad_ref[p:p + H, 0:p, :] = zcol                 # left halo cols
        xpad_ref[p:p + H, p + W:2 * p + W, :] = zcol     # right halo cols

    # --- stage the input plane once into the padded interior ------------------
    # The residual term is read back from this interior, so x is touched once.
    # TODO(synk): drop this VMEM->VMEM copy by taking x with memory_space=pl.ANY
    # and DMA-ing the HBM tile straight into xpad_ref (manual double-buffer).
    xpad_ref[p:p + H, p:p + W, :] = x_ref[0].astype(jnp.float32)

    # --- hoist per-channel vectors out of the hot loops ----------------------
    w_all = w_ref[...].astype(jnp.float32)        # (K*K, Cb)
    bias = b_ref[...].astype(jnp.float32)         # (1, Cb)
    scale = scale_ref[...].astype(jnp.float32)    # (1, Cb)
    shift = shift_ref[...].astype(jnp.float32)    # (1, Cb)

    n_strips = H // Hs

    def strip_body(s, carry):
        h0 = pl.multiple_of(s * Hs, Hs)
        # Accumulator for one H-strip lives entirely in vregs (~<=16 vregs f32):
        # no per-tap VMEM round-trip of the accumulator.
        acc = jnp.broadcast_to(bias[None, :, :], (Hs, W, Cb))
        # K*K taps unrolled; each source slice is read straight from the padded
        # scratch (shifted load on H/W only; lane axis never shifts).  Reading
        # from the ref per tap keeps register pressure bounded for large K.
        for dy in range(K):
            for dx in range(K):
                tap = w_all[dy * K + dx][None, None, :]             # (1,1,Cb)
                src = xpad_ref[pl.ds(h0 + dy, Hs), dx:dx + W, :]    # (Hs,W,Cb)
                acc = acc + tap * src
        acc = _gelu_tanh(acc)                                       # GELU (EUP)
        acc = acc * scale[None, :, :] + shift[None, :, :]           # BN (eval)
        resid = xpad_ref[pl.ds(h0 + p, Hs), p:p + W, :]             # residual x
        out = (acc + resid).astype(o_ref.dtype)
        o_ref[:, pl.ds(h0, Hs), :, :] = out[None]                   # store once
        return carry

    lax.fori_loop(0, n_strips, strip_body, 0)


def _pick_channel_block(N, C):
    """Largest multiple-of-128 divisor of C up to 512, keeping >=2 grid steps
    when possible (v7x megacore)."""
    if C % 128 != 0:
        return C
    cands = [c for c in range(128, min(C, 512) + 1, 128) if C % c == 0]
    c_blk = max(cands)
    if N * (C // c_blk) < 2:
        ok = [c for c in cands if N * (C // c) >= 2]
        if ok:
            c_blk = max(ok)
    return c_blk


def _pick_strip_rows(H, W, c_blk):
    """Strip height: keep the f32 accumulator around <=16 vregs (16K elements),
    capped at 8 rows, and dividing H exactly."""
    target = max(1, (16 * 1024) // max(1, W * c_blk))
    target = min(target, H, 8)
    hs = 1
    for d in range(1, target + 1):
        if H % d == 0:
            hs = d
    return hs


def residual_convmixer_block(x, dw_weight, dw_bias, bn_gamma, bn_beta,
                             bn_mean, bn_var, eps=1e-5):
    """y = BN(GELU(DepthwiseConv(x))) + x, NCHW in/out, fused Pallas kernel."""
    N, C, H, W = x.shape
    K = dw_weight.shape[-1]
    p = K // 2

    # Layout plumbing (wrapper-side): NCHW -> NHWC so C rides the 128-lane axis.
    x_nhwc = jnp.transpose(x, (0, 2, 3, 1))               # (N, H, W, C)

    # Fold BatchNorm (eval mode) into per-channel scale/shift; flatten taps to
    # (K*K, C) so each tap is a per-lane weight vector inside the kernel.
    scale = (bn_gamma / jnp.sqrt(bn_var + eps)).astype(jnp.float32)
    shift = (bn_beta - bn_mean * scale).astype(jnp.float32)
    w_taps = jnp.transpose(dw_weight.reshape(C, K * K), (1, 0)).astype(jnp.float32)
    bias = dw_bias.astype(jnp.float32).reshape(1, C)
    scale = scale.reshape(1, C)
    shift = shift.reshape(1, C)

    c_blk = _pick_channel_block(N, C)
    h_strip = _pick_strip_rows(H, W, c_blk)

    kernel = functools.partial(_residual_block_kernel, K=K, p=p, Hs=h_strip)
    y_nhwc = pl.pallas_call(
        kernel,
        out_shape=jax.ShapeDtypeStruct((N, H, W, C), x.dtype),
        grid=(N, C // c_blk),
        in_specs=[
            pl.BlockSpec((1, H, W, c_blk), lambda n, cb: (n, 0, 0, cb)),   # x
            pl.BlockSpec((K * K, c_blk), lambda n, cb: (0, cb)),           # taps
            pl.BlockSpec((1, c_blk), lambda n, cb: (0, cb)),               # bias
            pl.BlockSpec((1, c_blk), lambda n, cb: (0, cb)),               # scale
            pl.BlockSpec((1, c_blk), lambda n, cb: (0, cb)),               # shift
        ],
        out_specs=pl.BlockSpec((1, H, W, c_blk), lambda n, cb: (n, 0, 0, cb)),
        scratch_shapes=[pltpu.VMEM((H + 2 * p, W + 2 * p, c_blk), jnp.float32)],
        compiler_params=pltpu.CompilerParams(
            dimension_semantics=("parallel", "parallel"),
            vmem_limit_bytes=32 * 1024 * 1024),
    )(x_nhwc, w_taps, bias, scale, shift)

    return jnp.transpose(y_nhwc, (0, 3, 1, 2))            # back to NCHW


def _reference(x, dw_weight, dw_bias, bn_gamma, bn_beta, bn_mean, bn_var, eps=1e-5):
    N, C, H, W = x.shape
    K = dw_weight.shape[-1]
    p = K // 2
    xpad = jnp.pad(x, ((0, 0), (0, 0), (p, p), (p, p)))
    acc = jnp.zeros_like(x)
    for dy in range(K):
        for dx in range(K):
            acc = acc + dw_weight[:, dy, dx][None, :, None, None] * \
                xpad[:, :, dy:dy + H, dx:dx + W]
    acc = acc + dw_bias[None, :, None, None]
    acc = _gelu_tanh(acc)
    scale = bn_gamma / jnp.sqrt(bn_var + eps)
    shift = bn_beta - bn_mean * scale
    acc = acc * scale[None, :, None, None] + shift[None, :, None, None]
    return acc + x


def _make_params(key, N, C, H, W, K):
    kx, kw, kb, kg, kbt, km, kv = jax.random.split(key, 7)
    x = jax.random.normal(kx, (N, C, H, W), dtype=jnp.float32)
    # Depthwise Conv2d(dim, dim, K, groups=dim): PyTorch weight is (C, 1, K, K);
    # the singleton input-channel-per-group axis is dropped -> (C, K, K).
    dw_weight = 0.1 * jax.random.normal(kw, (C, K, K), dtype=jnp.float32)
    dw_bias = 0.1 * jax.random.normal(kb, (C,), dtype=jnp.float32)
    bn_gamma = 1.0 + 0.1 * jax.random.normal(kg, (C,), dtype=jnp.float32)
    bn_beta = 0.1 * jax.random.normal(kbt, (C,), dtype=jnp.float32)
    bn_mean = 0.1 * jax.random.normal(km, (C,), dtype=jnp.float32)
    bn_var = jnp.abs(jax.random.normal(kv, (C,), dtype=jnp.float32)) + 0.5
    return x, dw_weight, dw_bias, bn_gamma, bn_beta, bn_mean, bn_var


if __name__ == "__main__":
    key = jax.random.PRNGKey(0)
    k1, k2 = jax.random.split(key)

    # Primary small test (lane-sparse fallback path, multi-image grid).
    args = _make_params(k1, N=2, C=4, H=16, W=16, K=3)
    y = jax.block_until_ready(residual_convmixer_block(*args))
    y_ref = _reference(*args)
    assert y.shape == args[0].shape
    assert jnp.allclose(y, y_ref, atol=1e-5, rtol=1e-5), "mismatch (C=4 case)"

    # Secondary small test exercising the lane-dense (C % 128 == 0) path.
    args2 = _make_params(k2, N=1, C=128, H=8, W=8, K=3)
    y2 = jax.block_until_ready(residual_convmixer_block(*args2))
    y2_ref = _reference(*args2)
    assert y2.shape == args2[0].shape
    assert jnp.allclose(y2, y2_ref, atol=1e-5, rtol=1e-5), "mismatch (C=128 case)"

    print("KERNEL_OK")
</pallas_src>

<mosaic_0001>
module attributes {stable_mosaic.version = 11 : i64} {
  func.func @_residual_block_kernel(%arg0: i32, %arg1: i32, %arg2: memref<1x16x16x4xf32, #tpu.memory_space<vmem>>, %arg3: memref<9x4xf32, #tpu.memory_space<vmem>>, %arg4: memref<1x4xf32, #tpu.memory_space<vmem>>, %arg5: memref<1x4xf32, #tpu.memory_space<vmem>>, %arg6: memref<1x4xf32, #tpu.memory_space<vmem>>, %arg7: memref<1x16x16x4xf32, #tpu.memory_space<vmem>>, %arg8: memref<18x18x4xf32, #tpu.memory_space<vmem>>) attributes {dimension_semantics = [#tpu.dimension_semantics<parallel>, #tpu.dimension_semantics<parallel>], iteration_bounds = array<i64: 2, 1>, scalar_prefetch = 0 : i64, scratch_operands = 1 : i64, tpu.core_type = #tpu.core_type<tc>, window_params = [{transform_indices = @transform_0, window_bounds = array<i64: 1, 16, 16, 4>}, {transform_indices = @transform_1, window_bounds = array<i64: 9, 4>}, {transform_indices = @transform_2, window_bounds = array<i64: 1, 4>}, {transform_indices = @transform_3, window_bounds = array<i64: 1, 4>}, {transform_indices = @transform_4, window_bounds = array<i64: 1, 4>}, {transform_indices = @transform_5, window_bounds = array<i64: 1, 16, 16, 4>}]} {
    %cst = arith.constant 0.000000e+00 : f32
    %0 = vector.broadcast %cst : f32 to vector<1x18x4xf32>
    %cst_0 = arith.constant 0.000000e+00 : f32
    %1 = vector.broadcast %cst_0 : f32 to vector<16x1x4xf32>
    %c0 = arith.constant 0 : index
    %c0_1 = arith.constant 0 : index
    %c0_2 = arith.constant 0 : index
    %2 = vector.load %arg8[%c0, %c0_1, %c0_2] : memref<18x18x4xf32, #tpu.memory_space<vmem>>, vector<1x18x4xf32>
    tpu.vector_store %arg8[%c0, %c0_1, %c0_2], %0 {strides = array<i32>} : memref<18x18x4xf32, #tpu.memory_space<vmem>>, vector<1x18x4xf32>,
    %c17 = arith.constant 17 : index
    %c0_3 = arith.constant 0 : index
    %c0_4 = arith.constant 0 : index
    %3 = vector.load %arg8[%c17, %c0_3, %c0_4] : memref<18x18x4xf32, #tpu.memory_space<vmem>>, vector<1x18x4xf32>
    tpu.vector_store %arg8[%c17, %c0_3, %c0_4], %0 {strides = array<i32>} : memref<18x18x4xf32, #tpu.memory_space<vmem>>, vector<1x18x4xf32>,
    %c1 = arith.constant 1 : index
    %c0_5 = arith.constant 0 : index
    %c0_6 = arith.constant 0 : index
    %4 = vector.load %arg8[%c1, %c0_5, %c0_6] : memref<18x18x4xf32, #tpu.memory_space<vmem>>, vector<16x1x4xf32>
    tpu.vector_store %arg8[%c1, %c0_5, %c0_6], %1 {strides = array<i32>} : memref<18x18x4xf32, #tpu.memory_space<vmem>>, vector<16x1x4xf32>,
    %c1_7 = arith.constant 1 : index
    %c17_8 = arith.constant 17 : index
    %c0_9 = arith.constant 0 : index
    %5 = vector.load %arg8[%c1_7, %c17_8, %c0_9] : memref<18x18x4xf32, #tpu.memory_space<vmem>>, vector<16x1x4xf32>
    tpu.vector_store %arg8[%c1_7, %c17_8, %c0_9], %1 {strides = array<i32>} : memref<18x18x4xf32, #tpu.memory_space<vmem>>, vector<16x1x4xf32>,
    %c0_10 = arith.constant 0 : index
    %c0_11 = arith.constant 0 : index
    %c0_12 = arith.constant 0 : index
    %c0_13 = arith.constant 0 : index
    %6 = vector.load %arg2[%c0_10, %c0_11, %c0_12, %c0_13] : memref<1x16x16x4xf32, #tpu.memory_space<vmem>>, vector<1x16x16x4xf32>
    %7 = vector.shape_cast %6 : vector<1x16x16x4xf32> to vector<16x16x4xf32>
    %c1_14 = arith.constant 1 : index
    %c1_15 = arith.constant 1 : index
    %c0_16 = arith.constant 0 : index
    %8 = vector.load %arg8[%c1_14, %c1_15, %c0_16] : memref<18x18x4xf32, #tpu.memory_space<vmem>>, vector<16x16x4xf32>
    tpu.vector_store %arg8[%c1_14, %c1_15, %c0_16], %7 {strides = array<i32>} : memref<18x18x4xf32, #tpu.memory_space<vmem>>, vector<16x16x4xf32>,
    %c0_17 = arith.constant 0 : index
    %c0_18 = arith.constant 0 : index
    %9 = vector.load %arg3[%c0_17, %c0_18] : memref<9x4xf32, #tpu.memory_space<vmem>>, vector<9x4xf32>
    %c0_19 = arith.constant 0 : index
    %c0_20 = arith.constant 0 : index
    %10 = vector.load %arg4[%c0_19, %c0_20] : memref<1x4xf32, #tpu.memory_space<vmem>>, vector<1x4xf32>
    %c0_21 = arith.constant 0 : index
    %c0_22 = arith.constant 0 : index
    %11 = vector.load %arg5[%c0_21, %c0_22] : memref<1x4xf32, #tpu.memory_space<vmem>>, vector<1x4xf32>
    %c0_23 = arith.constant 0 : index
    %c0_24 = arith.constant 0 : index
    %12 = vector.load %arg6[%c0_23, %c0_24] : memref<1x4xf32, #tpu.memory_space<vmem>>, vector<1x4xf32>
    %c0_i32 = arith.constant 0 : i32
    %c2_i32 = arith.constant 2 : i32
    %13 = arith.addi %c0_i32, %c2_i32 : i32
    %c1_i32 = arith.constant 1 : i32
    scf.for %arg9 = %c0_i32 to %13 step %c1_i32  : i32 {
      %c8_i32 = arith.constant 8 : i32
      %14 = arith.muli %arg9, %c8_i32 : i32
      %15 = tpu.assume_multiple %14, 8 : i32
      %16 = vector.shape_cast %10 : vector<1x4xf32> to vector<1x1x4xf32>
      %17 = vector.shape_cast %16 : vector<1x1x4xf32> to vector<1x1x4xf32>
      %18 = vector.broadcast %17 : vector<1x1x4xf32> to vector<8x16x4xf32>
      %19 = vector.extract_strided_slice %9 {offsets = [0, 0], sizes = [1, 4], strides = [1, 1]} : vector<9x4xf32> to vector<1x4xf32>
      %20 = vector.shape_cast %19 : vector<1x4xf32> to vector<4xf32>
      %21 = vector.shape_cast %20 : vector<4xf32> to vector<1x1x4xf32>
      %c0_i32_26 = arith.constant 0 : i32
      %22 = arith.addi %15, %c0_i32_26 : i32
      %23 = arith.index_cast %22 : i32 to index
      %c0_27 = arith.constant 0 : index
      %c0_28 = arith.constant 0 : index
      %24 = vector.load %arg8[%23, %c0_27, %c0_28] : memref<18x18x4xf32, #tpu.memory_space<vmem>>, vector<8x16x4xf32>
      %25 = vector.broadcast %21 : vector<1x1x4xf32> to vector<8x16x4xf32>
      %26 = arith.mulf %25, %24 : vector<8x16x4xf32>
      %27 = arith.addf %18, %26 : vector<8x16x4xf32>
      %28 = vector.extract_strided_slice %9 {offsets = [1, 0], sizes = [1, 4], strides = [1, 1]} : vector<9x4xf32> to vector<1x4xf32>
      %29 = vector.shape_cast %28 : vector<1x4xf32> to vector<4xf32>
      %30 = vector.shape_cast %29 : vector<4xf32> to vector<1x1x4xf32>
      %c0_i32_29 = arith.constant 0 : i32
      %31 = arith.addi %15, %c0_i32_29 : i32
      %32 = arith.index_cast %31 : i32 to index
      %c1_30 = arith.constant 1 : index
      %c0_31 = arith.constant 0 : index
      %33 = vector.load %arg8[%32, %c1_30, %c0_31] : memref<18x18x4xf32, #tpu.memory_space<vmem>>, vector<8x16x4xf32>
      %34 = vector.broadcast %30 : vector<1x1x4xf32> to vector<8x16x4xf32>
      %35 = arith.mulf %34, %33 : vector<8x16x4xf32>
      %36 = arith.addf %27, %35 : vector<8x16x4xf32>
      %37 = vector.extract_strided_slice %9 {offsets = [2, 0], sizes = [1, 4], strides = [1, 1]} : vector<9x4xf32> to vector<1x4xf32>
      %38 = vector.shape_cast %37 : vector<1x4xf32> to vector<4xf32>
      %39 = vector.shape_cast %38 : vector<4xf32> to vector<1x1x4xf32>
      %c0_i32_32 = arith.constant 0 : i32
      %40 = arith.addi %15, %c0_i32_32 : i32
      %41 = arith.index_cast %40 : i32 to index
      %c2 = arith.constant 2 : index
      %c0_33 = arith.constant 0 : index
      %42 = vector.load %arg8[%41, %c2, %c0_33] : memref<18x18x4xf32, #tpu.memory_space<vmem>>, vector<8x16x4xf32>
      %43 = vector.broadcast %39 : vector<1x1x4xf32> to vector<8x16x4xf32>
      %44 = arith.mulf %43, %42 : vector<8x16x4xf32>
      %45 = arith.addf %36, %44 : vector<8x16x4xf32>
      %46 = vector.extract_strided_slice %9 {offsets = [3, 0], sizes = [1, 4], strides = [1, 1]} : vector<9x4xf32> to vector<1x4xf32>
      %47 = vector.shape_cast %46 : vector<1x4xf32> to vector<4xf32>
      %48 = vector.shape_cast %47 : vector<4xf32> to vector<1x1x4xf32>
      %c1_i32_34 = arith.constant 1 : i32
      %49 = arith.addi %15, %c1_i32_34 : i32
      %50 = arith.index_cast %49 : i32 to index
      %c0_35 = arith.constant 0 : index
      %c0_36 = arith.constant 0 : index
      %51 = vector.load %arg8[%50, %c0_35, %c0_36] : memref<18x18x4xf32, #tpu.memory_space<vmem>>, vector<8x16x4xf32>
      %52 = vector.broadcast %48 : vector<1x1x4xf32> to vector<8x16x4xf32>
      %53 = arith.mulf %52, %51 : vector<8x16x4xf32>
      %54 = arith.addf %45, %53 : vector<8x16x4xf32>
      %55 = vector.extract_strided_slice %9 {offsets = [4, 0], sizes = [1, 4], strides = [1, 1]} : vector<9x4xf32> to vector<1x4xf32>
      %56 = vector.shape_cast %55 : vector<1x4xf32> to vector<4xf32>
      %57 = vector.shape_cast %56 : vector<4xf32> to vector<1x1x4xf32>
      %c1_i32_37 = arith.constant 1 : i32
      %58 = arith.addi %15, %c1_i32_37 : i32
      %59 = arith.index_cast %58 : i32 to index
      %c1_38 = arith.constant 1 : index
      %c0_39 = arith.constant 0 : index
      %60 = vector.load %arg8[%59, %c1_38, %c0_39] : memref<18x18x4xf32, #tpu.memory_space<vmem>>, vector<8x16x4xf32>
      %61 = vector.broadcast %57 : vector<1x1x4xf32> to vector<8x16x4xf32>
      %62 = arith.mulf %61, %60 : vector<8x16x4xf32>
      %63 = arith.addf %54, %62 : vector<8x16x4xf32>
      %64 = vector.extract_strided_slice %9 {offsets = [5, 0], sizes = [1, 4], strides = [1, 1]} : vector<9x4xf32> to vector<1x4xf32>
      %65 = vector.shape_cast %64 : vector<1x4xf32> to vector<4xf32>
      %66 = vector.shape_cast %65 : vector<4xf32> to vector<1x1x4xf32>
      %c1_i32_40 = arith.constant 1 : i32
      %67 = arith.addi %15, %c1_i32_40 : i32
      %68 = arith.index_cast %67 : i32 to index
      %c2_41 = arith.constant 2 : index
      %c0_42 = arith.constant 0 : index
      %69 = vector.load %arg8[%68, %c2_41, %c0_42] : memref<18x18x4xf32, #tpu.memory_space<vmem>>, vector<8x16x4xf32>
      %70 = vector.broadcast %66 : vector<1x1x4xf32> to vector<8x16x4xf32>
      %71 = arith.mulf %70, %69 : vector<8x16x4xf32>
      %72 = arith.addf %63, %71 : vector<8x16x4xf32>
      %73 = vector.extract_strided_slice %9 {offsets = [6, 0], sizes = [1, 4], strides = [1, 1]} : vector<9x4xf32> to vector<1x4xf32>
      %74 = vector.shape_cast %73 : vector<1x4xf32> to vector<4xf32>
      %75 = vector.shape_cast %74 : vector<4xf32> to vector<1x1x4xf32>
      %c2_i32_43 = arith.constant 2 : i32
      %76 = arith.addi %15, %c2_i32_43 : i32
      %77 = arith.index_cast %76 : i32 to index
      %c0_44 = arith.constant 0 : index
      %c0_45 = arith.constant 0 : index
      %78 = vector.load %arg8[%77, %c0_44, %c0_45] : memref<18x18x4xf32, #tpu.memory_space<vmem>>, vector<8x16x4xf32>
      %79 = vector.broadcast %75 : vector<1x1x4xf32> to vector<8x16x4xf32>
      %80 = arith.mulf %79, %78 : vector<8x16x4xf32>
      %81 = arith.addf %72, %80 : vector<8x16x4xf32>
      %82 = vector.extract_strided_slice %9 {offsets = [7, 0], sizes = [1, 4], strides = [1, 1]} : vector<9x4xf32> to vector<1x4xf32>
      %83 = vector.shape_cast %82 : vector<1x4xf32> to vector<4xf32>
      %84 = vector.shape_cast %83 : vector<4xf32> to vector<1x1x4xf32>
      %c2_i32_46 = arith.constant 2 : i32
      %85 = arith.addi %15, %c2_i32_46 : i32
      %86 = arith.index_cast %85 : i32 to index
      %c1_47 = arith.constant 1 : index
      %c0_48 = arith.constant 0 : index
      %87 = vector.load %arg8[%86, %c1_47, %c0_48] : memref<18x18x4xf32, #tpu.memory_space<vmem>>, vector<8x16x4xf32>
      %88 = vector.broadcast %84 : vector<1x1x4xf32> to vector<8x16x4xf32>
      %89 = arith.mulf %88, %87 : vector<8x16x4xf32>
      %90 = arith.addf %81, %89 : vector<8x16x4xf32>
      %91 = vector.extract_strided_slice %9 {offsets = [8, 0], sizes = [1, 4], strides = [1, 1]} : vector<9x4xf32> to vector<1x4xf32>
      %92 = vector.shape_cast %91 : vector<1x4xf32> to vector<4xf32>
      %93 = vector.shape_cast %92 : vector<4xf32> to vector<1x1x4xf32>
      %c2_i32_49 = arith.constant 2 : i32
      %94 = arith.addi %15, %c2_i32_49 : i32
      %95 = arith.index_cast %94 : i32 to index
      %c2_50 = arith.constant 2 : index
      %c0_51 = arith.constant 0 : index
      %96 = vector.load %arg8[%95, %c2_50, %c0_51] : memref<18x18x4xf32, #tpu.memory_space<vmem>>, vector<8x16x4xf32>
      %97 = vector.broadcast %93 : vector<1x1x4xf32> to vector<8x16x4xf32>
      %98 = arith.mulf %97, %96 : vector<8x16x4xf32>
      %99 = arith.addf %90, %98 : vector<8x16x4xf32>
      %cst_52 = arith.constant 5.000000e-01 : f32
      %100 = vector.broadcast %cst_52 : f32 to vector<8x16x4xf32>
      %101 = arith.mulf %100, %99 : vector<8x16x4xf32>
      %cst_53 = arith.constant 4.471500e-02 : f32
      %102 = vector.broadcast %cst_53 : f32 to vector<8x16x4xf32>
      %103 = arith.mulf %102, %99 : vector<8x16x4xf32>
      %104 = arith.mulf %103, %99 : vector<8x16x4xf32>
      %105 = arith.mulf %104, %99 : vector<8x16x4xf32>
      %106 = arith.addf %99, %105 : vector<8x16x4xf32>
      %cst_54 = arith.constant 0.797884583 : f32
      %107 = vector.broadcast %cst_54 : f32 to vector<8x16x4xf32>
      %108 = arith.mulf %107, %106 : vector<8x16x4xf32>
      %109 = math.tanh %108 : vector<8x16x4xf32>
      %cst_55 = arith.constant 1.000000e+00 : f32
      %110 = vector.broadcast %cst_55 : f32 to vector<8x16x4xf32>
      %111 = arith.addf %110, %109 : vector<8x16x4xf32>
      %112 = arith.mulf %101, %111 : vector<8x16x4xf32>
      %113 = vector.shape_cast %11 : vector<1x4xf32> to vector<1x1x4xf32>
      %114 = vector.broadcast %113 : vector<1x1x4xf32> to vector<8x16x4xf32>
      %115 = arith.mulf %112, %114 : vector<8x16x4xf32>
      %116 = vector.shape_cast %12 : vector<1x4xf32> to vector<1x1x4xf32>
      %117 = vector.broadcast %116 : vector<1x1x4xf32> to vector<8x16x4xf32>
      %118 = arith.addf %115, %117 : vector<8x16x4xf32>
      %c1_i32_56 = arith.constant 1 : i32
      %119 = arith.addi %15, %c1_i32_56 : i32
      %120 = arith.index_cast %119 : i32 to index
      %c1_57 = arith.constant 1 : index
      %c0_58 = arith.constant 0 : index
      %121 = vector.load %arg8[%120, %c1_57, %c0_58] : memref<18x18x4xf32, #tpu.memory_space<vmem>>, vector<8x16x4xf32>
      %122 = arith.addf %118, %121 : vector<8x16x4xf32>
      %123 = vector.shape_cast %122 : vector<8x16x4xf32> to vector<1x8x16x4xf32>
      %c0_59 = arith.constant 0 : index
      %124 = arith.index_cast %15 : i32 to index
      %c0_60 = arith.constant 0 : index
      %c0_61 = arith.constant 0 : index
      %125 = vector.load %arg7[%c0_59, %124, %c0_60, %c0_61] : memref<1x16x16x4xf32, #tpu.memory_space<vmem>>, vector<1x8x16x4xf32>
      tpu.vector_store %arg7[%c0_59, %124, %c0_60, %c0_61], %123 {strides = array<i32>} : memref<1x16x16x4xf32, #tpu.memory_space<vmem>>, vector<1x8x16x4xf32>,
    }
    %c2_i32_25 = arith.constant 2 : i32
    return
  }
  func.func @transform_0(%arg0: i32, %arg1: i32) -> (i32, i32, i32, i32) {
    %c0_i32 = arith.constant 0 : i32
    %c0_i32_0 = arith.constant 0 : i32
    %c0_i32_1 = arith.constant 0 : i32
    return %arg0, %c0_i32, %c0_i32_0, %arg1 : i32, i32, i32, i32
  }
  func.func @transform_1(%arg0: i32, %arg1: i32) -> (i32, i32) {
    %c0_i32 = arith.constant 0 : i32
    %c0_i32_0 = arith.constant 0 : i32
    return %c0_i32, %arg1 : i32, i32
  }
  func.func @transform_2(%arg0: i32, %arg1: i32) -> (i32, i32) {
    %c0_i32 = arith.constant 0 : i32
    %c0_i32_0 = arith.constant 0 : i32
    return %c0_i32, %arg1 : i32, i32
  }
  func.func @transform_3(%arg0: i32, %arg1: i32) -> (i32, i32) {
    %c0_i32 = arith.constant 0 : i32
    %c0_i32_0 = arith.constant 0 : i32
    return %c0_i32, %arg1 : i32, i32
  }
  func.func @transform_4(%arg0: i32, %arg1: i32) -> (i32, i32) {
    %c0_i32 = arith.constant 0 : i32
    %c0_i32_0 = arith.constant 0 : i32
    return %c0_i32, %arg1 : i32, i32
  }
  func.func @transform_5(%arg0: i32, %arg1: i32) -> (i32, i32, i32, i32) {
    %c0_i32 = arith.constant 0 : i32
    %c0_i32_0 = arith.constant 0 : i32
    %c0_i32_1 = arith.constant 0 : i32
    return %arg0, %c0_i32, %c0_i32_0, %arg1 : i32, i32, i32, i32
  }
}

</mosaic_0001>

<llo_original>
// kernel: tpu_custom_call.1
$region0: #{tpu_custom_call.1}
  #allocation0 [shape = 'u32[]', space=smem, size = 0x4, offset = 0x4, fixed_abs, tag = 'smem constant byte address 0x4 - core index']
  #allocation1 [shape = 'u32[72,128]{1,0:T(1,128)}', space=vmem, size = 0x9000, scoped, tag = 'internal scratch']
  #allocation2 [shape = 'f32[18,18,4]{2,1,0:T(8,128)}', space=vmem, size = 0x36000, scoped, tag = 'scratch operand']
  %s0 = inlined_call_operand.vmem [shape: f32[2,16,16,4], index: 0, kind: input, shape index: {}]
  %s1 = inlined_call_operand.vmem [shape: f32[9,4], index: 1, kind: input, shape index: {}]
  %s2 = inlined_call_operand.vmem [shape: f32[1,4], index: 2, kind: input, shape index: {}]
  %s3 = inlined_call_operand.vmem [shape: f32[1,4], index: 3, kind: input, shape index: {}]
  %s4 = inlined_call_operand.vmem [shape: f32[1,4], index: 4, kind: input, shape index: {}]
  %s5 = inlined_call_operand.vmem [shape: f32[2,16,16,4], index: 5, kind: output, shape index: {}]
  %s6 = sld [smem:[#allocation0]]
  $region60: #{tpu_custom_call.1} parent=0
    _
  %s8 = ssub.s32 1, %s6
  %s9 = scalar_select 0, %s8, %s6
  loop: start=0, step=1, limit=4
  $region2: #{tpu_custom_call.1} parent=0 // loop_pre_header
    _
  $region3: #{tpu_custom_call.1} parent=0 // loop_header
    %s11 = sphi 0, %s15
    %p12 = scmp.ge.s32.totalorder %s11, 4
    %s18 = sphi 0, %s30
    %s19 = sphi 0, %s26
    %s20 = sphi 0, %s18
    %s21 = sphi 0, %s19
    %s22 = sphi 0, %s20
    %s23 = sphi 0, %s21
    %s35 = sphi 0, %s37
    %s38 = sphi 0, %s35
    %s39 = sphi 0, %s38
    %s55 = sphi 0, %s39
    %s61 = sphi 0, %s63
    %s64 = sphi 0, %s61
    %s65 = sphi 0, %s64
    %s81 = sphi 0, %s65
    %s87 = sphi 0, %s89
    %s90 = sphi 0, %s87
    %s91 = sphi 0, %s90
    %s107 = sphi 0, %s91
    %s113 = sphi 0, %s115
    %s116 = sphi 0, %s113
    %s117 = sphi 0, %s116
    %s133 = sphi 0, %s117
    %s139 = sphi 0, %s141
    %s142 = sphi 0, %s139
    %s143 = sphi 0, %s142
    %s159 = sphi 0, %s143
    %s167 = sphi 0, %s169
    %s170 = sphi 0, %s167
    %s171 = sphi 0, %s170
    %s187 = sphi 0, %s171
  $region4: #{tpu_custom_call.1} parent=0 // loop_header_branch
    %14 = sbr.rel (%p12) target = $region8
  $region5: #{tpu_custom_call.1} parent=0 // loop_body
    %s16 = ssub.s32 %s11, 1
    %s17 = ssub.s32 %s11, 2
    %s24 = sadd.s32 1, %s19
    %p25 = scmp.ge.s32.totalorder %s24, 1
    %s26 = scalar_select %p25, 0, %s24
    %s27 = sadd.s32 1, %s18
    %s28 = scalar_select %p25, %s27, %s18
    %p29 = scmp.ge.s32.totalorder %s28, 2
    %s30 = scalar_select %p29, 0, %s28
    %s31 = ssub.s32 %s18, %s30
    %s32 = ssub.s32 %s19, %s26
    %s33 = sor.u32 %s31, %s32
    %p34 = scmp.eq.s32.totalorder %s33, 0
    %s36 = sadd.s32 %s35, 1
    %s37 = scalar_select %p34, %s35, %s36
    %p40 = pneg %p34
    %p41 = scmp.eq.s32.totalorder %s11, 1
    %p42 = por %p40, %p41
    %p43 = scmp.ne.s32.totalorder %s35, %s38
    %p44 = scmp.eq.s32.totalorder %s11, 0
    %p45 = por %p43, %p44
    %p46 = scmp.ne.s32.totalorder %s35, %s38
    %p47 = scmp.eq.s32.totalorder %s16, 1
    %p48 = por %p46, %p47
    %p49 = scmp.ne.s32.totalorder %s38, %s39
    %p50 = scmp.eq.s32.totalorder %s16, 0
    %p51 = por %p49, %p50
    %p52 = scmp.ne.s32.totalorder %s38, %s39
    %p53 = scmp.eq.s32.totalorder %s17, 1
    %p54 = por %p52, %p53
    %p56 = scmp.ne.s32.totalorder %s39, %s55
    %p57 = scmp.eq.s32.totalorder %s17, 0
    %p58 = por %p56, %p57
    %s59 = ssub.s32 %s19, %s26
    %p60 = scmp.eq.s32.totalorder %s59, 0
    %s62 = sadd.s32 %s61, 1
    %s63 = scalar_select %p60, %s61, %s62
    %p66 = pneg %p60
    %p67 = scmp.eq.s32.totalorder %s11, 1
    %p68 = por %p66, %p67
    %p69 = scmp.ne.s32.totalorder %s61, %s64
    %p70 = scmp.eq.s32.totalorder %s11, 0
    %p71 = por %p69, %p70
    %p72 = scmp.ne.s32.totalorder %s61, %s64
    %p73 = scmp.eq.s32.totalorder %s16, 1
    %p74 = por %p72, %p73
    %p75 = scmp.ne.s32.totalorder %s64, %s65
    %p76 = scmp.eq.s32.totalorder %s16, 0
    %p77 = por %p75, %p76
    %p78 = scmp.ne.s32.totalorder %s64, %s65
    %p79 = scmp.eq.s32.totalorder %s17, 1
    %p80 = por %p78, %p79
    %p82 = scmp.ne.s32.totalorder %s65, %s81
    %p83 = scmp.eq.s32.totalorder %s17, 0
    %p84 = por %p82, %p83
    %s85 = ssub.s32 %s19, %s26
    %p86 = scmp.eq.s32.totalorder %s85, 0
    %s88 = sadd.s32 %s87, 1
    %s89 = scalar_select %p86, %s87, %s88
    %p92 = pneg %p86
    %p93 = scmp.eq.s32.totalorder %s11, 1
    %p94 = por %p92, %p93
    %p95 = scmp.ne.s32.totalorder %s87, %s90
    %p96 = scmp.eq.s32.totalorder %s11, 0
    %p97 = por %p95, %p96
    %p98 = scmp.ne.s32.totalorder %s87, %s90
    %p99 = scmp.eq.s32.totalorder %s16, 1
    %p100 = por %p98, %p99
    %p101 = scmp.ne.s32.totalorder %s90, %s91
    %p102 = scmp.eq.s32.totalorder %s16, 0
    %p103 = por %p101, %p102
    %p104 = scmp.ne.s32.totalorder %s90, %s91
    %p105 = scmp.eq.s32.totalorder %s17, 1
    %p106 = por %p104, %p105
    %p108 = scmp.ne.s32.totalorder %s91, %s107
    %p109 = scmp.eq.s32.totalorder %s17, 0
    %p110 = por %p108, %p109
    %s111 = ssub.s32 %s19, %s26
    %p112 = scmp.eq.s32.totalorder %s111, 0
    %s114 = sadd.s32 %s113, 1
    %s115 = scalar_select %p112, %s113, %s114
    %p118 = pneg %p112
    %p119 = scmp.eq.s32.totalorder %s11, 1
    %p120 = por %p118, %p119
    %p121 = scmp.ne.s32.totalorder %s113, %s116
    %p122 = scmp.eq.s32.totalorder %s11, 0
    %p123 = por %p121, %p122
    %p124 = scmp.ne.s32.totalorder %s113, %s116
    %p125 = scmp.eq.s32.totalorder %s16, 1
    %p126 = por %p124, %p125
    %p127 = scmp.ne.s32.totalorder %s116, %s117
    %p128 = scmp.eq.s32.totalorder %s16, 0
    %p129 = por %p127, %p128
    %p130 = scmp.ne.s32.totalorder %s116, %s117
    %p131 = scmp.eq.s32.totalorder %s17, 1
    %p132 = por %p130, %p131
    %p134 = scmp.ne.s32.totalorder %s117, %s133
    %p135 = scmp.eq.s32.totalorder %s17, 0
    %p136 = por %p134, %p135
    %s137 = ssub.s32 %s19, %s26
    %p138 = scmp.eq.s32.totalorder %s137, 0
    %s140 = sadd.s32 %s139, 1
    %s141 = scalar_select %p138, %s139, %s140
    %p144 = pneg %p138
    %p145 = scmp.eq.s32.totalorder %s11, 1
    %p146 = por %p144, %p145
    %p147 = scmp.ne.s32.totalorder %s139, %s142
    %p148 = scmp.eq.s32.totalorder %s11, 0
    %p149 = por %p147, %p148
    %p150 = scmp.ne.s32.totalorder %s139, %s142
    %p151 = scmp.eq.s32.totalorder %s16, 1
    %p152 = por %p150, %p151
    %p153 = scmp.ne.s32.totalorder %s142, %s143
    %p154 = scmp.eq.s32.totalorder %s16, 0
    %p155 = por %p153, %p154
    %p156 = scmp.ne.s32.totalorder %s142, %s143
    %p157 = scmp.eq.s32.totalorder %s17, 1
    %p158 = por %p156, %p157
    %p160 = scmp.ne.s32.totalorder %s143, %s159
    %p161 = scmp.eq.s32.totalorder %s17, 0
    %p162 = por %p160, %p161
    %s163 = ssub.s32 %s18, %s30
    %s164 = ssub.s32 %s19, %s26
    %s165 = sor.u32 %s163, %s164
    %p166 = scmp.eq.s32.totalorder %s165, 0
    %s168 = sadd.s32 %s167, 1
    %s169 = scalar_select %p166, %s167, %s168
    %p172 = pneg %p166
    %p173 = scmp.eq.s32.totalorder %s11, 1
    %p174 = por %p172, %p173
    %p175 = scmp.ne.s32.totalorder %s167, %s170
    %p176 = scmp.eq.s32.totalorder %s11, 0
    %p177 = por %p175, %p176
    %p178 = scmp.ne.s32.totalorder %s167, %s170
    %p179 = scmp.eq.s32.totalorder %s16, 1
    %p180 = por %p178, %p179
    %p181 = scmp.ne.s32.totalorder %s170, %s171
    %p182 = scmp.eq.s32.totalorder %s16, 0
    %p183 = por %p181, %p182
    %p184 = scmp.ne.s32.totalorder %s170, %s171
    %p185 = scmp.eq.s32.totalorder %s17, 1
    %p186 = por %p184, %p185
    %p188 = scmp.ne.s32.totalorder %s171, %s187
    %p189 = scmp.eq.s32.totalorder %s17, 0
    %p190 = por %p188, %p189
    %p191 = scmp.le.s32.totalorder 1, %s11
    %p192 = scmp.lt.s32.totalorder %s11, 3
    %p193 = pnand %p191, %p192
    %p194 = pneg %p193
    // Predicated region
    $region9: #{tpu_custom_call.1} parent=5 // pred_check
      _
    $region10: #{tpu_custom_call.1} parent=5 // pred_check_branch
      %196 = sbr.rel (%p193) target = $region12
    $region11: #{tpu_custom_call.1} parent=5 // pred_region
      %s197 = ssub.s32 %s11, 1
      // Predicated region
      $region13: #{tpu_custom_call.1} parent=11 // pred_check
        %p198 = pneg %p77
      $region14: #{tpu_custom_call.1} parent=11 // pred_check_branch
        %200 = sbr.rel (%p198) target = $region16
      $region15: #{tpu_custom_call.1} parent=11 // pred_region
        %p201 = scmp.lt.s32.totalorder %s21, 0
        %s202 = scalar_select %p201, %s21, 0
        %s203 = smul.addr %s202, 8
        %s204 = scalar_lea.vmem %s1, %s203
      $region16: #{tpu_custom_call.1} parent=11 // pred_fallthru
        _
      // Predicated region
      $region17: #{tpu_custom_call.1} parent=11 // pred_check
        %p205 = pneg %p103
      $region18: #{tpu_custom_call.1} parent=11 // pred_check_branch
        %207 = sbr.rel (%p205) target = $region20
      $region19: #{tpu_custom_call.1} parent=11 // pred_region
        %p208 = scmp.lt.s32.totalorder %s21, 0
        %s209 = scalar_select %p208, %s21, 0
        %s210 = scalar_lea.vmem %s2, %s209
      $region20: #{tpu_custom_call.1} parent=11 // pred_fallthru
        _
      // Predicated region
      $region21: #{tpu_custom_call.1} parent=11 // pred_check
        %p211 = pneg %p129
      $region22: #{tpu_custom_call.1} parent=11 // pred_check_branch
        %213 = sbr.rel (%p211) target = $region24
      $region23: #{tpu_custom_call.1} parent=11 // pred_region
        %p214 = scmp.lt.s32.totalorder %s21, 0
        %s215 = scalar_select %p214, %s21, 0
        %s216 = scalar_lea.vmem %s3, %s215
      $region24: #{tpu_custom_call.1} parent=11 // pred_fallthru
        _
      // Predicated region
      $region25: #{tpu_custom_call.1} parent=11 // pred_check
        %p217 = pneg %p155
      $region26: #{tpu_custom_call.1} parent=11 // pred_check_branch
        %219 = sbr.rel (%p217) target = $region28
      $region27: #{tpu_custom_call.1} parent=11 // pred_region
        %p220 = scmp.lt.s32.totalorder %s21, 0
        %s221 = scalar_select %p220, %s21, 0
        %s222 = scalar_lea.vmem %s4, %s221
      $region28: #{tpu_custom_call.1} parent=11 // pred_fallthru
        _
    $region12: #{tpu_custom_call.1} parent=5 // pred_fallthru
      _
    %p223 = scmp.lt.s32.totalorder %s11, 2
    // Predicated region
    $region29: #{tpu_custom_call.1} parent=5 // pred_check
      %p224 = pneg %p223
    $region30: #{tpu_custom_call.1} parent=5 // pred_check_branch
      %226 = sbr.rel (%p224) target = $region32
    $region31: #{tpu_custom_call.1} parent=5 // pred_region
      // Predicated region
      $region33: #{tpu_custom_call.1} parent=31 // pred_check
        %p227 = pneg %p45
      $region34: #{tpu_custom_call.1} parent=31 // pred_check_branch
        %229 = sbr.rel (%p227) target = $region36
      $region35: #{tpu_custom_call.1} parent=31 // pred_region
        %p230 = scmp.lt.s32.totalorder %s18, 1
        %s231 = scalar_select %p230, %s18, 1
        %p232 = scmp.lt.s32.totalorder %s19, 0
        %s233 = scalar_select %p232, %s19, 0
        %s234 = smul.addr %s231, 32
        %s235 = sadd.s32 %s233, %s234
        %s236 = smul.addr %s235, 8
        %s237 = scalar_lea.vmem %s0, %s236
      $region36: #{tpu_custom_call.1} parent=31 // pred_fallthru
        _
    $region32: #{tpu_custom_call.1} parent=5 // pred_fallthru
      _
    %p238 = scmp.le.s32.totalorder 1, %s11
    %p239 = scmp.lt.s32.totalorder %s11, 3
    %p240 = pnand %p238, %p239
    %p241 = pneg %p240
    // Predicated region
    $region37: #{tpu_custom_call.1} parent=5 // pred_check
      _
    $region38: #{tpu_custom_call.1} parent=5 // pred_check_branch
      %243 = sbr.rel (%p240) target = $region40
    $region39: #{tpu_custom_call.1} parent=5 // pred_region
      %s244 = ssub.s32 %s11, 1
      %p245 = scmp.lt.s32.totalorder %s20, 1
      %s246 = scalar_select %p245, %s20, 1
      %p247 = scmp.lt.s32.totalorder %s21, 0
      %s248 = scalar_select %p247, %s21, 0
      %s249 = smul.addr %s246, 32
      %s250 = sadd.s32 %s248, %s249
      %s251 = smul.addr %s250, 8
      %s252 = scalar_lea.vmem %s0, %s251
      %p253 = pneg %p51
      %p254 = pneg %p48
      %p255 = scmp.lt.s32.totalorder %s21, 0
      %s256 = scalar_select %p255, %s21, 0
      %s257 = smul.addr %s256, 8
      %s258 = scalar_lea.vmem %s1, %s257
      %p259 = pneg %p77
      %p260 = pneg %p74
      %p261 = scmp.lt.s32.totalorder %s21, 0
      %s262 = scalar_select %p261, %s21, 0
      %s263 = scalar_lea.vmem %s2, %s262
      %p264 = pneg %p103
      %p265 = pneg %p100
      %p266 = scmp.lt.s32.totalorder %s21, 0
      %s267 = scalar_select %p266, %s21, 0
      %s268 = scalar_lea.vmem %s3, %s267
      %p269 = pneg %p129
      %p270 = pneg %p126
      %p271 = scmp.lt.s32.totalorder %s21, 0
      %s272 = scalar_select %p271, %s21, 0
      %s273 = scalar_lea.vmem %s4, %s272
      %p274 = pneg %p155
      %p275 = pneg %p152
      %p276 = pneg %p183
      %p277 = pneg %p180
      %p278 = scmp.lt.s32.totalorder %s20, 1
      %s279 = scalar_select %p278, %s20, 1
      %p280 = scmp.lt.s32.totalorder %s21, 0
      %s281 = scalar_select %p280, %s21, 0
      %s282 = smul.addr %s279, 32
      %s283 = sadd.s32 %s281, %s282
      %s284 = smul.addr %s283, 8
      %s285 = scalar_lea.vmem %s5, %s284
      %p286 = scmp.lt.s32.totalorder %s20, 1
      %s287 = scalar_select %p286, %s20, 1
      %p288 = scmp.lt.s32.totalorder %s21, 0
      %s289 = scalar_select %p288, %s21, 0
      %s290 = smul.addr %s287, 32
      %s291 = sadd.s32 %s289, %s290
      %s292 = smul.addr %s291, 8
      %s293 = scalar_lea.vmem %s0, %s292
      %p294 = scmp.lt.s32.totalorder %s21, 0
      %s295 = scalar_select %p294, %s21, 0
      %s296 = smul.addr %s295, 8
      %s297 = scalar_lea.vmem %s1, %s296
      %p298 = scmp.lt.s32.totalorder %s21, 0
      %s299 = scalar_select %p298, %s21, 0
      %s300 = scalar_lea.vmem %s2, %s299
      %p301 = scmp.lt.s32.totalorder %s21, 0
      %s302 = scalar_select %p301, %s21, 0
      %s303 = scalar_lea.vmem %s3, %s302
      %p304 = scmp.lt.s32.totalorder %s21, 0
      %s305 = scalar_select %p304, %s21, 0
      %s306 = scalar_lea.vmem %s4, %s305
      %p307 = scmp.lt.s32.totalorder %s20, 1
      %s308 = scalar_select %p307, %s20, 1
      %p309 = scmp.lt.s32.totalorder %s21, 0
      %s310 = scalar_select %p309, %s21, 0
      %s311 = smul.addr %s308, 32
      %s312 = sadd.s32 %s310, %s311
      %s313 = smul.addr %s312, 8
      %s314 = scalar_lea.vmem %s5, %s313
      %vm315 = vcmask 31744
      %316 = vst.msk [vmem:[#allocation2] sm:$0xff] %vm315, 0.0
      %317 = vst.msk [vmem:[#allocation2 + $0x8] sm:$0xff] %vm315, 0.0
      %vm318 = vcmask 25600
      %319 = vst.msk [vmem:[#allocation2 + $0x10] sm:$0x3] %vm318, 0.0
      %s320 = scalar_lea.vmem [#allocation2], 408
      %321 = vst.msk [vmem:[%s320] sm:$0xff] %vm315, 0.0
      %322 = vst.msk [vmem:[%s320 + $0x8] sm:$0xff] %vm315, 0.0
      %323 = vst.msk [vmem:[%s320 + $0x10] sm:$0x3] %vm318, 0.0
      %s324 = scalar_lea.vmem [#allocation2], 24
      %vm325 = vcmask 24576
      %326 = vst.msk [vmem:[%s324] sm:$0x1] %vm325, 0.0
      %327 = vst.msk [vmem:[%s324 + $0x18] sm:$0x1] %vm325, 0.0
      %328 = vst.msk [vmem:[%s324 + $0x30] sm:$0x1] %vm325, 0.0
      %329 = vst.msk [vmem:[%s324 + $0x48] sm:$0x1] %vm325, 0.0
      %330 = vst.msk [vmem:[%s324 + $0x60] sm:$0x1] %vm325, 0.0
      %331 = vst.msk [vmem:[%s324 + $0x78] sm:$0x1] %vm325, 0.0
      %332 = vst.msk [vmem:[%s324 + $0x90] sm:$0x1] %vm325, 0.0
      %333 = vst.msk [vmem:[%s324 + $0xa8] sm:$0x1] %vm325, 0.0
      %334 = vst.msk [vmem:[%s324 + $0xc0] sm:$0x1] %vm325, 0.0
      %335 = vst.msk [vmem:[%s324 + $0xd8] sm:$0x1] %vm325, 0.0
      %336 = vst.msk [vmem:[%s324 + $0xf0] sm:$0x1] %vm325, 0.0
      %337 = vst.msk [vmem:[%s324 + $0x108] sm:$0x1] %vm325, 0.0
      %338 = vst.msk [vmem:[%s324 + $0x120] sm:$0x1] %vm325, 0.0
      %339 = vst.msk [vmem:[%s324 + $0x138] sm:$0x1] %vm325, 0.0
      %340 = vst.msk [vmem:[%s324 + $0x150] sm:$0x1] %vm325, 0.0
      %341 = vst.msk [vmem:[%s324 + $0x168] sm:$0x1] %vm325, 0.0
      %342 = vst.msk [vmem:[%s324 + $0x11] sm:$0x1] %vm325, 0.0
      %343 = vst.msk [vmem:[%s324 + $0x29] sm:$0x1] %vm325, 0.0
      %344 = vst.msk [vmem:[%s324 + $0x41] sm:$0x1] %vm325, 0.0
      %345 = vst.msk [vmem:[%s324 + $0x59] sm:$0x1] %vm325, 0.0
      %346 = vst.msk [vmem:[%s324 + $0x71] sm:$0x1] %vm325, 0.0
      %347 = vst.msk [vmem:[%s324 + $0x89] sm:$0x1] %vm325, 0.0
      %348 = vst.msk [vmem:[%s324 + $0xa1] sm:$0x1] %vm325, 0.0
      %349 = vst.msk [vmem:[%s324 + $0xb9] sm:$0x1] %vm325, 0.0
      %350 = vst.msk [vmem:[%s324 + $0xd1] sm:$0x1] %vm325, 0.0
      %351 = vst.msk [vmem:[%s324 + $0xe9] sm:$0x1] %vm325, 0.0
      %352 = vst.msk [vmem:[%s324 + $0x101] sm:$0x1] %vm325, 0.0
      %353 = vst.msk [vmem:[%s324 + $0x119] sm:$0x1] %vm325, 0.0
      %354 = vst.msk [vmem:[%s324 + $0x131] sm:$0x1] %vm325, 0.0
      %355 = vst.msk [vmem:[%s324 + $0x149] sm:$0x1] %vm325, 0.0
      %356 = vst.msk [vmem:[%s324 + $0x161] sm:$0x1] %vm325, 0.0
      %357 = vst.msk [vmem:[%s324 + $0x179] sm:$0x1] %vm325, 0.0
      %v358 = vld [vmem:[%s293] sm:$0xff]
      %v359 = vld [vmem:[%s293 + $0x8] sm:$0xff]
      %v360 = vld [vmem:[%s293 + $0x10] sm:$0xff]
      %v361 = vld [vmem:[%s293 + $0x18] sm:$0xff]
      %v362 = vld [vmem:[%s293 + $0x20] sm:$0xff]
      %v363 = vld [vmem:[%s293 + $0x28] sm:$0xff]
      %v364 = vld [vmem:[%s293 + $0x30] sm:$0xff]
      %v365 = vld [vmem:[%s293 + $0x38] sm:$0xff]
      %v366 = vld [vmem:[%s293 + $0x40] sm:$0xff]
      %v367 = vld [vmem:[%s293 + $0x48] sm:$0xff]
      %v368 = vld [vmem:[%s293 + $0x50] sm:$0xff]
      %v369 = vld [vmem:[%s293 + $0x58] sm:$0xff]
      %v370 = vld [vmem:[%s293 + $0x60] sm:$0xff]
      %v371 = vld [vmem:[%s293 + $0x68] sm:$0xff]
      %v372 = vld [vmem:[%s293 + $0x70] sm:$0xff]
      %v373 = vld [vmem:[%s293 + $0x78] sm:$0xff]
      %v374 = vld [vmem:[%s293 + $0x80] sm:$0xff]
      %v375 = vld [vmem:[%s293 + $0x88] sm:$0xff]
      %v376 = vld [vmem:[%s293 + $0x90] sm:$0xff]
      %v377 = vld [vmem:[%s293 + $0x98] sm:$0xff]
      %v378 = vld [vmem:[%s293 + $0xa0] sm:$0xff]
      %v379 = vld [vmem:[%s293 + $0xa8] sm:$0xff]
      %v380 = vld [vmem:[%s293 + $0xb0] sm:$0xff]
      %v381 = vld [vmem:[%s293 + $0xb8] sm:$0xff]
      %v382 = vld [vmem:[%s293 + $0xc0] sm:$0xff]
      %v383 = vld [vmem:[%s293 + $0xc8] sm:$0xff]
      %v384 = vld [vmem:[%s293 + $0xd0] sm:$0xff]
      %v385 = vld [vmem:[%s293 + $0xd8] sm:$0xff]
      %v386 = vld [vmem:[%s293 + $0xe0] sm:$0xff]
      %v387 = vld [vmem:[%s293 + $0xe8] sm:$0xff]
      %v388 = vld [vmem:[%s293 + $0xf0] sm:$0xff]
      %v389 = vld [vmem:[%s293 + $0xf8] sm:$0xff]
      %390 = vst.msk [vmem:[%s324 + $0x1] sm:$0xff] %vm315, %v358
      %391 = vst.msk [vmem:[%s324 + $0x9] sm:$0xff] %vm315, %v359
      %392 = vst.msk [vmem:[%s324 + $0x19] sm:$0xff] %vm315, %v360
      %393 = vst.msk [vmem:[%s324 + $0x21] sm:$0xff] %vm315, %v361
      %394 = vst.msk [vmem:[%s324 + $0x31] sm:$0xff] %vm315, %v362
      %395 = vst.msk [vmem:[%s324 + $0x39] sm:$0xff] %vm315, %v363
      %396 = vst.msk [vmem:[%s324 + $0x49] sm:$0xff] %vm315, %v364
      %397 = vst.msk [vmem:[%s324 + $0x51] sm:$0xff] %vm315, %v365
      %398 = vst.msk [vmem:[%s324 + $0x61] sm:$0xff] %vm315, %v366
      %399 = vst.msk [vmem:[%s324 + $0x69] sm:$0xff] %vm315, %v367
      %400 = vst.msk [vmem:[%s324 + $0x79] sm:$0xff] %vm315, %v368
      %401 = vst.msk [vmem:[%s324 + $0x81] sm:$0xff] %vm315, %v369
      %402 = vst.msk [vmem:[%s324 + $0x91] sm:$0xff] %vm315, %v370
      %403 = vst.msk [vmem:[%s324 + $0x99] sm:$0xff] %vm315, %v371
      %404 = vst.msk [vmem:[%s324 + $0xa9] sm:$0xff] %vm315, %v372
      %405 = vst.msk [vmem:[%s324 + $0xb1] sm:$0xff] %vm315, %v373
      %406 = vst.msk [vmem:[%s324 + $0xc1] sm:$0xff] %vm315, %v374
      %407 = vst.msk [vmem:[%s324 + $0xc9] sm:$0xff] %vm315, %v375
      %408 = vst.msk [vmem:[%s324 + $0xd9] sm:$0xff] %vm315, %v376
      %409 = vst.msk [vmem:[%s324 + $0xe1] sm:$0xff] %vm315, %v377
      %410 = vst.msk [vmem:[%s324 + $0xf1] sm:$0xff] %vm315, %v378
      %411 = vst.msk [vmem:[%s324 + $0xf9] sm:$0xff] %vm315, %v379
      %412 = vst.msk [vmem:[%s324 + $0x109] sm:$0xff] %vm315, %v380
      %413 = vst.msk [vmem:[%s324 + $0x111] sm:$0xff] %vm315, %v381
      %414 = vst.msk [vmem:[%s324 + $0x121] sm:$0xff] %vm315, %v382
      %415 = vst.msk [vmem:[%s324 + $0x129] sm:$0xff] %vm315, %v383
      %416 = vst.msk [vmem:[%s324 + $0x139] sm:$0xff] %vm315, %v384
      %417 = vst.msk [vmem:[%s324 + $0x141] sm:$0xff] %vm315, %v385
      %418 = vst.msk [vmem:[%s324 + $0x151] sm:$0xff] %vm315, %v386
      %419 = vst.msk [vmem:[%s324 + $0x159] sm:$0xff] %vm315, %v387
      %420 = vst.msk [vmem:[%s324 + $0x169] sm:$0xff] %vm315, %v388
      %421 = vst.msk [vmem:[%s324 + $0x171] sm:$0xff] %vm315, %v389
      %v422 = vld [vmem:[%s297] sm:$0xff]
      %v423 = vld [vmem:[%s297 + $0x8] sm:$0x1]
      %v424 = vld [vmem:[%s300] sm:$0x1]
      %v425 = vld [vmem:[%s303] sm:$0x1]
      %v426 = vld [vmem:[%s306] sm:$0x1]
      loop: start=0, step=1, limit=2
      $region41: #{tpu_custom_call.1} parent=39 // loop_pre_header
        _
      $region42: #{tpu_custom_call.1} parent=39 // loop_header
        %s428 = sphi 0, %s432
        %p429 = scmp.ge.s32.totalorder %s428, 2
      $region43: #{tpu_custom_call.1} parent=39 // loop_header_branch
        %431 = sbr.rel (%p429) target = $region47
      $region44: #{tpu_custom_call.1} parent=39 // loop_body
        %s433 = smul.u32 %s428, 8
        %v435 = vperm.slane %v424, 0
        %s437 = smul.u32 %s433, 24
        %s438 = scalar_lea.vmem [#allocation2], %s437
        %v439 = vld [vmem:[%s438] sm:$0xff]
        %v440 = vld [vmem:[%s438 + $0x8] sm:$0xff]
        %v441 = vld [vmem:[%s438 + $0x18] sm:$0xff]
        %v442 = vld [vmem:[%s438 + $0x20] sm:$0xff]
        %v443 = vld [vmem:[%s438 + $0x30] sm:$0xff]
        %v444 = vld [vmem:[%s438 + $0x38] sm:$0xff]
        %v445 = vld [vmem:[%s438 + $0x48] sm:$0xff]
        %v446 = vld [vmem:[%s438 + $0x50] sm:$0xff]
        %v447 = vld [vmem:[%s438 + $0x60] sm:$0xff]
        %v448 = vld [vmem:[%s438 + $0x68] sm:$0xff]
        %v449 = vld [vmem:[%s438 + $0x78] sm:$0xff]
        %v450 = vld [vmem:[%s438 + $0x80] sm:$0xff]
        %v451 = vld [vmem:[%s438 + $0x90] sm:$0xff]
        %v452 = vld [vmem:[%s438 + $0x98] sm:$0xff]
        %v453 = vld [vmem:[%s438 + $0xa8] sm:$0xff]
        %v454 = vld [vmem:[%s438 + $0xb0] sm:$0xff]
        %v455 = vperm.slane %v422, 0
        %v456 = vmul.f32 %v455, %v439
        %v457 = vmul.f32 %v455, %v440
        %v458 = vmul.f32 %v455, %v441
        %v459 = vmul.f32 %v455, %v442
        %v460 = vmul.f32 %v455, %v443
        %v461 = vmul.f32 %v455, %v444
        %v462 = vmul.f32 %v455, %v445
        %v463 = vmul.f32 %v455, %v446
        %v464 = vmul.f32 %v455, %v447
        %v465 = vmul.f32 %v455, %v448
        %v466 = vmul.f32 %v455, %v449
        %v467 = vmul.f32 %v455, %v450
        %v468 = vmul.f32 %v455, %v451
        %v469 = vmul.f32 %v455, %v452
        %v470 = vmul.f32 %v455, %v453
        %v471 = vmul.f32 %v455, %v454
        %v472 = vadd.f32 %v435, %v456
        %v473 = vadd.f32 %v435, %v457
        %v474 = vadd.f32 %v435, %v458
        %v475 = vadd.f32 %v435, %v459
        %v476 = vadd.f32 %v435, %v460
        %v477 = vadd.f32 %v435, %v461
        %v478 = vadd.f32 %v435, %v462
        %v479 = vadd.f32 %v435, %v463
        %v480 = vadd.f32 %v435, %v464
        %v481 = vadd.f32 %v435, %v465
        %v482 = vadd.f32 %v435, %v466
        %v483 = vadd.f32 %v435, %v467
        %v484 = vadd.f32 %v435, %v468
        %v485 = vadd.f32 %v435, %v469
        %v486 = vadd.f32 %v435, %v470
        %v487 = vadd.f32 %v435, %v471
        %v488 = vld [vmem:[%s438 + $0x1] sm:$0xff]
        %v489 = vld [vmem:[%s438 + $0x9] sm:$0xff]
        %v490 = vld [vmem:[%s438 + $0x19] sm:$0xff]
        %v491 = vld [vmem:[%s438 + $0x21] sm:$0xff]
        %v492 = vld [vmem:[%s438 + $0x31] sm:$0xff]
        %v493 = vld [vmem:[%s438 + $0x39] sm:$0xff]
        %v494 = vld [vmem:[%s438 + $0x49] sm:$0xff]
        %v495 = vld [vmem:[%s438 + $0x51] sm:$0xff]
        %v496 = vld [vmem:[%s438 + $0x61] sm:$0xff]
        %v497 = vld [vmem:[%s438 + $0x69] sm:$0xff]
        %v498 = vld [vmem:[%s438 + $0x79] sm:$0xff]
        %v499 = vld [vmem:[%s438 + $0x81] sm:$0xff]
        %v500 = vld [vmem:[%s438 + $0x91] sm:$0xff]
        %v501 = vld [vmem:[%s438 + $0x99] sm:$0xff]
        %v502 = vld [vmem:[%s438 + $0xa9] sm:$0xff]
        %v503 = vld [vmem:[%s438 + $0xb1] sm:$0xff]
        %v504 = vperm.slane %v422, 1
        %v505 = vmul.f32 %v504, %v488
        %v506 = vmul.f32 %v504, %v489
        %v507 = vmul.f32 %v504, %v490
        %v508 = vmul.f32 %v504, %v491
        %v509 = vmul.f32 %v504, %v492
        %v510 = vmul.f32 %v504, %v493
        %v511 = vmul.f32 %v504, %v494
        %v512 = vmul.f32 %v504, %v495
        %v513 = vmul.f32 %v504, %v496
        %v514 = vmul.f32 %v504, %v497
        %v515 = vmul.f32 %v504, %v498
        %v516 = vmul.f32 %v504, %v499
        %v517 = vmul.f32 %v504, %v500
        %v518 = vmul.f32 %v504, %v501
        %v519 = vmul.f32 %v504, %v502
        %v520 = vmul.f32 %v504, %v503
        %v521 = vadd.f32 %v472, %v505
        %v522 = vadd.f32 %v473, %v506
        %v523 = vadd.f32 %v474, %v507
        %v524 = vadd.f32 %v475, %v508
        %v525 = vadd.f32 %v476, %v509
        %v526 = vadd.f32 %v477, %v510
        %v527 = vadd.f32 %v478, %v511
        %v528 = vadd.f32 %v479, %v512
        %v529 = vadd.f32 %v480, %v513
        %v530 = vadd.f32 %v481, %v514
        %v531 = vadd.f32 %v482, %v515
        %v532 = vadd.f32 %v483, %v516
        %v533 = vadd.f32 %v484, %v517
        %v534 = vadd.f32 %v485, %v518
        %v535 = vadd.f32 %v486, %v519
        %v536 = vadd.f32 %v487, %v520
        %v537 = vld [vmem:[%s438 + $0x2] sm:$0xff]
        %v538 = vld [vmem:[%s438 + $0xa] sm:$0xff]
        %v539 = vld [vmem:[%s438 + $0x1a] sm:$0xff]
        %v540 = vld [vmem:[%s438 + $0x22] sm:$0xff]
        %v541 = vld [vmem:[%s438 + $0x32] sm:$0xff]
        %v542 = vld [vmem:[%s438 + $0x3a] sm:$0xff]
        %v543 = vld [vmem:[%s438 + $0x4a] sm:$0xff]
        %v544 = vld [vmem:[%s438 + $0x52] sm:$0xff]
        %v545 = vld [vmem:[%s438 + $0x62] sm:$0xff]
        %v546 = vld [vmem:[%s438 + $0x6a] sm:$0xff]
        %v547 = vld [vmem:[%s438 + $0x7a] sm:$0xff]
        %v548 = vld [vmem:[%s438 + $0x82] sm:$0xff]
        %v549 = vld [vmem:[%s438 + $0x92] sm:$0xff]
        %v550 = vld [vmem:[%s438 + $0x9a] sm:$0xff]
        %v551 = vld [vmem:[%s438 + $0xaa] sm:$0xff]
        %v552 = vld [vmem:[%s438 + $0xb2] sm:$0xff]
        %v553 = vperm.slane %v422, 2
        %v554 = vmul.f32 %v553, %v537
        %v555 = vmul.f32 %v553, %v538
        %v556 = vmul.f32 %v553, %v539
        %v557 = vmul.f32 %v553, %v540
        %v558 = vmul.f32 %v553, %v541
        %v559 = vmul.f32 %v553, %v542
        %v560 = vmul.f32 %v553, %v543
        %v561 = vmul.f32 %v553, %v544
        %v562 = vmul.f32 %v553, %v545
        %v563 = vmul.f32 %v553, %v546
        %v564 = vmul.f32 %v553, %v547
        %v565 = vmul.f32 %v553, %v548
        %v566 = vmul.f32 %v553, %v549
        %v567 = vmul.f32 %v553, %v550
        %v568 = vmul.f32 %v553, %v551
        %v569 = vmul.f32 %v553, %v552
        %v570 = vadd.f32 %v521, %v554
        %v571 = vadd.f32 %v522, %v555
        %v572 = vadd.f32 %v523, %v556
        %v573 = vadd.f32 %v524, %v557
        %v574 = vadd.f32 %v525, %v558
        %v575 = vadd.f32 %v526, %v559
        %v576 = vadd.f32 %v527, %v560
        %v577 = vadd.f32 %v528, %v561
        %v578 = vadd.f32 %v529, %v562
        %v579 = vadd.f32 %v530, %v563
        %v580 = vadd.f32 %v531, %v564
        %v581 = vadd.f32 %v532, %v565
        %v582 = vadd.f32 %v533, %v566
        %v583 = vadd.f32 %v534, %v567
        %v584 = vadd.f32 %v535, %v568
        %v585 = vadd.f32 %v536, %v569
        %s586 = sadd.s32 %s433, 1
        %s587 = smul.u32 %s586, 24
        %s588 = scalar_lea.vmem [#allocation2], %s587
        %v589 = vld [vmem:[%s588] sm:$0xff]
        %v590 = vld [vmem:[%s588 + $0x8] sm:$0xff]
        %v591 = vld [vmem:[%s588 + $0x18] sm:$0xff]
        %v592 = vld [vmem:[%s588 + $0x20] sm:$0xff]
        %v593 = vld [vmem:[%s588 + $0x30] sm:$0xff]
        %v594 = vld [vmem:[%s588 + $0x38] sm:$0xff]
        %v595 = vld [vmem:[%s588 + $0x48] sm:$0xff]
        %v596 = vld [vmem:[%s588 + $0x50] sm:$0xff]
        %v597 = vld [vmem:[%s588 + $0x60] sm:$0xff]
        %v598 = vld [vmem:[%s588 + $0x68] sm:$0xff]
        %v599 = vld [vmem:[%s588 + $0x78] sm:$0xff]
        %v600 = vld [vmem:[%s588 + $0x80] sm:$0xff]
        %v601 = vld [vmem:[%s588 + $0x90] sm:$0xff]
        %v602 = vld [vmem:[%s588 + $0x98] sm:$0xff]
        %v603 = vld [vmem:[%s588 + $0xa8] sm:$0xff]
        %v604 = vld [vmem:[%s588 + $0xb0] sm:$0xff]
        %v605 = vperm.slane %v422, 3
        %v606 = vmul.f32 %v605, %v589
        %v607 = vmul.f32 %v605, %v590
        %v608 = vmul.f32 %v605, %v591
        %v609 = vmul.f32 %v605, %v592
        %v610 = vmul.f32 %v605, %v593
        %v611 = vmul.f32 %v605, %v594
        %v612 = vmul.f32 %v605, %v595
        %v613 = vmul.f32 %v605, %v596
        %v614 = vmul.f32 %v605, %v597
        %v615 = vmul.f32 %v605, %v598
        %v616 = vmul.f32 %v605, %v599
        %v617 = vmul.f32 %v605, %v600
        %v618 = vmul.f32 %v605, %v601
        %v619 = vmul.f32 %v605, %v602
        %v620 = vmul.f32 %v605, %v603
        %v621 = vmul.f32 %v605, %v604
        %v622 = vadd.f32 %v570, %v606
        %v623 = vadd.f32 %v571, %v607
        %v624 = vadd.f32 %v572, %v608
        %v625 = vadd.f32 %v573, %v609
        %v626 = vadd.f32 %v574, %v610
        %v627 = vadd.f32 %v575, %v611
        %v628 = vadd.f32 %v576, %v612
        %v629 = vadd.f32 %v577, %v613
        %v630 = vadd.f32 %v578, %v614
        %v631 = vadd.f32 %v579, %v615
        %v632 = vadd.f32 %v580, %v616
        %v633 = vadd.f32 %v581, %v617
        %v634 = vadd.f32 %v582, %v618
        %v635 = vadd.f32 %v583, %v619
        %v636 = vadd.f32 %v584, %v620
        %v637 = vadd.f32 %v585, %v621
        %v638 = vld [vmem:[%s588 + $0x1] sm:$0xff]
        %v639 = vld [vmem:[%s588 + $0x9] sm:$0xff]
        %v640 = vld [vmem:[%s588 + $0x19] sm:$0xff]
        %v641 = vld [vmem:[%s588 + $0x21] sm:$0xff]
        %v642 = vld [vmem:[%s588 + $0x31] sm:$0xff]
        %v643 = vld [vmem:[%s588 + $0x39] sm:$0xff]
        %v644 = vld [vmem:[%s588 + $0x49] sm:$0xff]
        %v645 = vld [vmem:[%s588 + $0x51] sm:$0xff]
        %v646 = vld [vmem:[%s588 + $0x61] sm:$0xff]
        %v647 = vld [vmem:[%s588 + $0x69] sm:$0xff]
        %v648 = vld [vmem:[%s588 + $0x79] sm:$0xff]
        %v649 = vld [vmem:[%s588 + $0x81] sm:$0xff]
        %v650 = vld [vmem:[%s588 + $0x91] sm:$0xff]
        %v651 = vld [vmem:[%s588 + $0x99] sm:$0xff]
        %v652 = vld [vmem:[%s588 + $0xa9] sm:$0xff]
        %v653 = vld [vmem:[%s588 + $0xb1] sm:$0xff]
        %v654 = vperm.slane %v422, 4
        %v655 = vmul.f32 %v654, %v638
        %v656 = vmul.f32 %v654, %v639
        %v657 = vmul.f32 %v654, %v640
        %v658 = vmul.f32 %v654, %v641
        %v659 = vmul.f32 %v654, %v642
        %v660 = vmul.f32 %v654, %v643
        %v661 = vmul.f32 %v654, %v644
        %v662 = vmul.f32 %v654, %v645
        %v663 = vmul.f32 %v654, %v646
        %v664 = vmul.f32 %v654, %v647
        %v665 = vmul.f32 %v654, %v648
        %v666 = vmul.f32 %v654, %v649
        %v667 = vmul.f32 %v654, %v650
        %v668 = vmul.f32 %v654, %v651
        %v669 = vmul.f32 %v654, %v652
        %v670 = vmul.f32 %v654, %v653
        %v671 = vadd.f32 %v622, %v655
        %v672 = vadd.f32 %v623, %v656
        %v673 = vadd.f32 %v624, %v657
        %v674 = vadd.f32 %v625, %v658
        %v675 = vadd.f32 %v626, %v659
        %v676 = vadd.f32 %v627, %v660
        %v677 = vadd.f32 %v628, %v661
        %v678 = vadd.f32 %v629, %v662
        %v679 = vadd.f32 %v630, %v663
        %v680 = vadd.f32 %v631, %v664
        %v681 = vadd.f32 %v632, %v665
        %v682 = vadd.f32 %v633, %v666
        %v683 = vadd.f32 %v634, %v667
        %v684 = vadd.f32 %v635, %v668
        %v685 = vadd.f32 %v636, %v669
        %v686 = vadd.f32 %v637, %v670
        %v687 = vld [vmem:[%s588 + $0x2] sm:$0xff]
        %v688 = vld [vmem:[%s588 + $0xa] sm:$0xff]
        %v689 = vld [vmem:[%s588 + $0x1a] sm:$0xff]
        %v690 = vld [vmem:[%s588 + $0x22] sm:$0xff]
        %v691 = vld [vmem:[%s588 + $0x32] sm:$0xff]
        %v692 = vld [vmem:[%s588 + $0x3a] sm:$0xff]
        %v693 = vld [vmem:[%s588 + $0x4a] sm:$0xff]
        %v694 = vld [vmem:[%s588 + $0x52] sm:$0xff]
        %v695 = vld [vmem:[%s588 + $0x62] sm:$0xff]
        %v696 = vld [vmem:[%s588 + $0x6a] sm:$0xff]
        %v697 = vld [vmem:[%s588 + $0x7a] sm:$0xff]
        %v698 = vld [vmem:[%s588 + $0x82] sm:$0xff]
        %v699 = vld [vmem:[%s588 + $0x92] sm:$0xff]
        %v700 = vld [vmem:[%s588 + $0x9a] sm:$0xff]
        %v701 = vld [vmem:[%s588 + $0xaa] sm:$0xff]
        %v702 = vld [vmem:[%s588 + $0xb2] sm:$0xff]
        %v703 = vperm.slane %v422, 5
        %v704 = vmul.f32 %v703, %v687
        %v705 = vmul.f32 %v703, %v688
        %v706 = vmul.f32 %v703, %v689
        %v707 = vmul.f32 %v703, %v690
        %v708 = vmul.f32 %v703, %v691
        %v709 = vmul.f32 %v703, %v692
        %v710 = vmul.f32 %v703, %v693
        %v711 = vmul.f32 %v703, %v694
        %v712 = vmul.f32 %v703, %v695
        %v713 = vmul.f32 %v703, %v696
        %v714 = vmul.f32 %v703, %v697
        %v715 = vmul.f32 %v703, %v698
        %v716 = vmul.f32 %v703, %v699
        %v717 = vmul.f32 %v703, %v700
        %v718 = vmul.f32 %v703, %v701
        %v719 = vmul.f32 %v703, %v702
        %v720 = vadd.f32 %v671, %v704
        %v721 = vadd.f32 %v672, %v705
        %v722 = vadd.f32 %v673, %v706
        %v723 = vadd.f32 %v674, %v707
        %v724 = vadd.f32 %v675, %v708
        %v725 = vadd.f32 %v676, %v709
        %v726 = vadd.f32 %v677, %v710
        %v727 = vadd.f32 %v678, %v711
        %v728 = vadd.f32 %v679, %v712
        %v729 = vadd.f32 %v680, %v713
        %v730 = vadd.f32 %v681, %v714
        %v731 = vadd.f32 %v682, %v715
        %v732 = vadd.f32 %v683, %v716
        %v733 = vadd.f32 %v684, %v717
        %v734 = vadd.f32 %v685, %v718
        %v735 = vadd.f32 %v686, %v719
        %s736 = sadd.s32 %s433, 2
        %s737 = smul.u32 %s736, 24
        %s738 = scalar_lea.vmem [#allocation2], %s737
        %v739 = vld [vmem:[%s738] sm:$0xff]
        %v740 = vld [vmem:[%s738 + $0x8] sm:$0xff]
        %v741 = vld [vmem:[%s738 + $0x18] sm:$0xff]
        %v742 = vld [vmem:[%s738 + $0x20] sm:$0xff]
        %v743 = vld [vmem:[%s738 + $0x30] sm:$0xff]
        %v744 = vld [vmem:[%s738 + $0x38] sm:$0xff]
        %v745 = vld [vmem:[%s738 + $0x48] sm:$0xff]
        %v746 = vld [vmem:[%s738 + $0x50] sm:$0xff]
        %v747 = vld [vmem:[%s738 + $0x60] sm:$0xff]
        %v748 = vld [vmem:[%s738 + $0x68] sm:$0xff]
        %v749 = vld [vmem:[%s738 + $0x78] sm:$0xff]
        %v750 = vld [vmem:[%s738 + $0x80] sm:$0xff]
        %v751 = vld [vmem:[%s738 + $0x90] sm:$0xff]
        %v752 = vld [vmem:[%s738 + $0x98] sm:$0xff]
        %v753 = vld [vmem:[%s738 + $0xa8] sm:$0xff]
        %v754 = vld [vmem:[%s738 + $0xb0] sm:$0xff]
        %v755 = vperm.slane %v422, 6
        %v756 = vmul.f32 %v755, %v739
        %v757 = vmul.f32 %v755, %v740
        %v758 = vmul.f32 %v755, %v741
        %v759 = vmul.f32 %v755, %v742
        %v760 = vmul.f32 %v755, %v743
        %v761 = vmul.f32 %v755, %v744
        %v762 = vmul.f32 %v755, %v745
        %v763 = vmul.f32 %v755, %v746
        %v764 = vmul.f32 %v755, %v747
        %v765 = vmul.f32 %v755, %v748
        %v766 = vmul.f32 %v755, %v749
        %v767 = vmul.f32 %v755, %v750
        %v768 = vmul.f32 %v755, %v751
        %v769 = vmul.f32 %v755, %v752
        %v770 = vmul.f32 %v755, %v753
        %v771 = vmul.f32 %v755, %v754
        %v772 = vadd.f32 %v720, %v756
        %v773 = vadd.f32 %v721, %v757
        %v774 = vadd.f32 %v722, %v758
        %v775 = vadd.f32 %v723, %v759
        %v776 = vadd.f32 %v724, %v760
        %v777 = vadd.f32 %v725, %v761
        %v778 = vadd.f32 %v726, %v762
        %v779 = vadd.f32 %v727, %v763
        %v780 = vadd.f32 %v728, %v764
        %v781 = vadd.f32 %v729, %v765
        %v782 = vadd.f32 %v730, %v766
        %v783 = vadd.f32 %v731, %v767
        %v784 = vadd.f32 %v732, %v768
        %v785 = vadd.f32 %v733, %v769
        %v786 = vadd.f32 %v734, %v770
        %v787 = vadd.f32 %v735, %v771
        %v788 = vld [vmem:[%s738 + $0x1] sm:$0xff]
        %v789 = vld [vmem:[%s738 + $0x9] sm:$0xff]
        %v790 = vld [vmem:[%s738 + $0x19] sm:$0xff]
        %v791 = vld [vmem:[%s738 + $0x21] sm:$0xff]
        %v792 = vld [vmem:[%s738 + $0x31] sm:$0xff]
        %v793 = vld [vmem:[%s738 + $0x39] sm:$0xff]
        %v794 = vld [vmem:[%s738 + $0x49] sm:$0xff]
        %v795 = vld [vmem:[%s738 + $0x51] sm:$0xff]
        %v796 = vld [vmem:[%s738 + $0x61] sm:$0xff]
        %v797 = vld [vmem:[%s738 + $0x69] sm:$0xff]
        %v798 = vld [vmem:[%s738 + $0x79] sm:$0xff]
        %v799 = vld [vmem:[%s738 + $0x81] sm:$0xff]
        %v800 = vld [vmem:[%s738 + $0x91] sm:$0xff]
        %v801 = vld [vmem:[%s738 + $0x99] sm:$0xff]
        %v802 = vld [vmem:[%s738 + $0xa9] sm:$0xff]
        %v803 = vld [vmem:[%s738 + $0xb1] sm:$0xff]
        %v804 = vperm.slane %v422, 7
        %v805 = vmul.f32 %v804, %v788
        %v806 = vmul.f32 %v804, %v789
        %v807 = vmul.f32 %v804, %v790
        %v808 = vmul.f32 %v804, %v791
        %v809 = vmul.f32 %v804, %v792
        %v810 = vmul.f32 %v804, %v793
        %v811 = vmul.f32 %v804, %v794
        %v812 = vmul.f32 %v804, %v795
        %v813 = vmul.f32 %v804, %v796
        %v814 = vmul.f32 %v804, %v797
        %v815 = vmul.f32 %v804, %v798
        %v816 = vmul.f32 %v804, %v799
        %v817 = vmul.f32 %v804, %v800
        %v818 = vmul.f32 %v804, %v801
        %v819 = vmul.f32 %v804, %v802
        %v820 = vmul.f32 %v804, %v803
        %v821 = vadd.f32 %v772, %v805
        %v822 = vadd.f32 %v773, %v806
        %v823 = vadd.f32 %v774, %v807
        %v824 = vadd.f32 %v775, %v808
        %v825 = vadd.f32 %v776, %v809
        %v826 = vadd.f32 %v777, %v810
        %v827 = vadd.f32 %v778, %v811
        %v828 = vadd.f32 %v779, %v812
        %v829 = vadd.f32 %v780, %v813
        %v830 = vadd.f32 %v781, %v814
        %v831 = vadd.f32 %v782, %v815
        %v832 = vadd.f32 %v783, %v816
        %v833 = vadd.f32 %v784, %v817
        %v834 = vadd.f32 %v785, %v818
        %v835 = vadd.f32 %v786, %v819
        %v836 = vadd.f32 %v787, %v820
        %v837 = vld [vmem:[%s738 + $0x2] sm:$0xff]
        %v838 = vld [vmem:[%s738 + $0xa] sm:$0xff]
        %v839 = vld [vmem:[%s738 + $0x1a] sm:$0xff]
        %v840 = vld [vmem:[%s738 + $0x22] sm:$0xff]
        %v841 = vld [vmem:[%s738 + $0x32] sm:$0xff]
        %v842 = vld [vmem:[%s738 + $0x3a] sm:$0xff]
        %v843 = vld [vmem:[%s738 + $0x4a] sm:$0xff]
        %v844 = vld [vmem:[%s738 + $0x52] sm:$0xff]
        %v845 = vld [vmem:[%s738 + $0x62] sm:$0xff]
        %v846 = vld [vmem:[%s738 + $0x6a] sm:$0xff]
        %v847 = vld [vmem:[%s738 + $0x7a] sm:$0xff]
        %v848 = vld [vmem:[%s738 + $0x82] sm:$0xff]
        %v849 = vld [vmem:[%s738 + $0x92] sm:$0xff]
        %v850 = vld [vmem:[%s738 + $0x9a] sm:$0xff]
        %v851 = vld [vmem:[%s738 + $0xaa] sm:$0xff]
        %v852 = vld [vmem:[%s738 + $0xb2] sm:$0xff]
        %v853 = vperm.slane %v423, 0
        %v854 = vmul.f32 %v853, %v837
        %v855 = vmul.f32 %v853, %v838
        %v856 = vmul.f32 %v853, %v839
        %v857 = vmul.f32 %v853, %v840
        %v858 = vmul.f32 %v853, %v841
        %v859 = vmul.f32 %v853, %v842
        %v860 = vmul.f32 %v853, %v843
        %v861 = vmul.f32 %v853, %v844
        %v862 = vmul.f32 %v853, %v845
        %v863 = vmul.f32 %v853, %v846
        %v864 = vmul.f32 %v853, %v847
        %v865 = vmul.f32 %v853, %v848
        %v866 = vmul.f32 %v853, %v849
        %v867 = vmul.f32 %v853, %v850
        %v868 = vmul.f32 %v853, %v851
        %v869 = vmul.f32 %v853, %v852
        %v870 = vadd.f32 %v821, %v854
        %v871 = vadd.f32 %v822, %v855
        %v872 = vadd.f32 %v823, %v856
        %v873 = vadd.f32 %v824, %v857
        %v874 = vadd.f32 %v825, %v858
        %v875 = vadd.f32 %v826, %v859
        %v876 = vadd.f32 %v827, %v860
        %v877 = vadd.f32 %v828, %v861
        %v878 = vadd.f32 %v829, %v862
        %v879 = vadd.f32 %v830, %v863
        %v880 = vadd.f32 %v831, %v864
        %v881 = vadd.f32 %v832, %v865
        %v882 = vadd.f32 %v833, %v866
        %v883 = vadd.f32 %v834, %v867
        %v884 = vadd.f32 %v835, %v868
        %v885 = vadd.f32 %v836, %v869
        %v886 = vmul.f32 %v870, 0.5
        %v887 = vmul.f32 %v871, 0.5
        %v888 = vmul.f32 %v872, 0.5
        %v889 = vmul.f32 %v873, 0.5
        %v890 = vmul.f32 %v874, 0.5
        %v891 = vmul.f32 %v875, 0.5
        %v892 = vmul.f32 %v876, 0.5
        %v893 = vmul.f32 %v877, 0.5
        %v894 = vmul.f32 %v878, 0.5
        %v895 = vmul.f32 %v879, 0.5
        %v896 = vmul.f32 %v880, 0.5
        %v897 = vmul.f32 %v881, 0.5
        %v898 = vmul.f32 %v882, 0.5
        %v899 = vmul.f32 %v883, 0.5
        %v900 = vmul.f32 %v884, 0.5
        %v901 = vmul.f32 %v885, 0.5
        %v902 = vmul.f32 %v870, 0.044715
        %v903 = vmul.f32 %v871, 0.044715
        %v904 = vmul.f32 %v872, 0.044715
        %v905 = vmul.f32 %v873, 0.044715
        %v906 = vmul.f32 %v874, 0.044715
        %v907 = vmul.f32 %v875, 0.044715
        %v908 = vmul.f32 %v876, 0.044715
        %v909 = vmul.f32 %v877, 0.044715
        %v910 = vmul.f32 %v878, 0.044715
        %v911 = vmul.f32 %v879, 0.044715
        %v912 = vmul.f32 %v880, 0.044715
        %v913 = vmul.f32 %v881, 0.044715
        %v914 = vmul.f32 %v882, 0.044715
        %v915 = vmul.f32 %v883, 0.044715
        %v916 = vmul.f32 %v884, 0.044715
        %v917 = vmul.f32 %v885, 0.044715
        %v918 = vmul.f32 %v902, %v870
        %v919 = vmul.f32 %v903, %v871
        %v920 = vmul.f32 %v904, %v872
        %v921 = vmul.f32 %v905, %v873
        %v922 = vmul.f32 %v906, %v874
        %v923 = vmul.f32 %v907, %v875
        %v924 = vmul.f32 %v908, %v876
        %v925 = vmul.f32 %v909, %v877
        %v926 = vmul.f32 %v910, %v878
        %v927 = vmul.f32 %v911, %v879
        %v928 = vmul.f32 %v912, %v880
        %v929 = vmul.f32 %v913, %v881
        %v930 = vmul.f32 %v914, %v882
        %v931 = vmul.f32 %v915, %v883
        %v932 = vmul.f32 %v916, %v884
        %v933 = vmul.f32 %v917, %v885
        %v934 = vmul.f32 %v918, %v870
        %v935 = vmul.f32 %v919, %v871
        %v936 = vmul.f32 %v920, %v872
        %v937 = vmul.f32 %v921, %v873
        %v938 = vmul.f32 %v922, %v874
        %v939 = vmul.f32 %v923, %v875
        %v940 = vmul.f32 %v924, %v876
        %v941 = vmul.f32 %v925, %v877
        %v942 = vmul.f32 %v926, %v878
        %v943 = vmul.f32 %v927, %v879
        %v944 = vmul.f32 %v928, %v880
        %v945 = vmul.f32 %v929, %v881
        %v946 = vmul.f32 %v930, %v882
        %v947 = vmul.f32 %v931, %v883
        %v948 = vmul.f32 %v932, %v884
        %v949 = vmul.f32 %v933, %v885
        %v950 = vadd.f32 %v870, %v934
        %v951 = vadd.f32 %v871, %v935
        %v952 = vadd.f32 %v872, %v936
        %v953 = vadd.f32 %v873, %v937
        %v954 = vadd.f32 %v874, %v938
        %v955 = vadd.f32 %v875, %v939
        %v956 = vadd.f32 %v876, %v940
        %v957 = vadd.f32 %v877, %v941
        %v958 = vadd.f32 %v878, %v942
        %v959 = vadd.f32 %v879, %v943
        %v960 = vadd.f32 %v880, %v944
        %v961 = vadd.f32 %v881, %v945
        %v962 = vadd.f32 %v882, %v946
        %v963 = vadd.f32 %v883, %v947
        %v964 = vadd.f32 %v884, %v948
        %v965 = vadd.f32 %v885, %v949
        %v966 = vmul.f32 %v950, 0.7978846
        %v967 = vmul.f32 %v951, 0.7978846
        %v968 = vmul.f32 %v952, 0.7978846
        %v969 = vmul.f32 %v953, 0.7978846
        %v970 = vmul.f32 %v954, 0.7978846
        %v971 = vmul.f32 %v955, 0.7978846
        %v972 = vmul.f32 %v956, 0.7978846
        %v973 = vmul.f32 %v957, 0.7978846
        %v974 = vmul.f32 %v958, 0.7978846
        %v975 = vmul.f32 %v959, 0.7978846
        %v976 = vmul.f32 %v960, 0.7978846
        %v977 = vmul.f32 %v961, 0.7978846
        %v978 = vmul.f32 %v962, 0.7978846
        %v979 = vmul.f32 %v963, 0.7978846
        %v980 = vmul.f32 %v964, 0.7978846
        %v981 = vmul.f32 %v965, 0.7978846
        %v982 = vtanh.pop %v966
        %v983 = vtanh.pop %v967
        %v984 = vtanh.pop %v968
        %v985 = vtanh.pop %v969
        %v986 = vtanh.pop %v970
        %v987 = vtanh.pop %v971
        %v988 = vtanh.pop %v972
        %v989 = vtanh.pop %v973
        %v990 = vtanh.pop %v974
        %v991 = vtanh.pop %v975
        %v992 = vtanh.pop %v976
        %v993 = vtanh.pop %v977
        %v994 = vtanh.pop %v978
        %v995 = vtanh.pop %v979
        %v996 = vtanh.pop %v980
        %v997 = vtanh.pop %v981
        %v998 = vadd.f32 %v982, 1.0
        %v999 = vadd.f32 %v983, 1.0
        %v1000 = vadd.f32 %v984, 1.0
        %v1001 = vadd.f32 %v985, 1.0
        %v1002 = vadd.f32 %v986, 1.0
        %v1003 = vadd.f32 %v987, 1.0
        %v1004 = vadd.f32 %v988, 1.0
        %v1005 = vadd.f32 %v989, 1.0
        %v1006 = vadd.f32 %v990, 1.0
        %v1007 = vadd.f32 %v991, 1.0
        %v1008 = vadd.f32 %v992, 1.0
        %v1009 = vadd.f32 %v993, 1.0
        %v1010 = vadd.f32 %v994, 1.0
        %v1011 = vadd.f32 %v995, 1.0
        %v1012 = vadd.f32 %v996, 1.0
        %v1013 = vadd.f32 %v997, 1.0
        %v1014 = vmul.f32 %v886, %v998
        %v1015 = vmul.f32 %v887, %v999
        %v1016 = vmul.f32 %v888, %v1000
        %v1017 = vmul.f32 %v889, %v1001
        %v1018 = vmul.f32 %v890, %v1002
        %v1019 = vmul.f32 %v891, %v1003
        %v1020 = vmul.f32 %v892, %v1004
        %v1021 = vmul.f32 %v893, %v1005
        %v1022 = vmul.f32 %v894, %v1006
        %v1023 = vmul.f32 %v895, %v1007
        %v1024 = vmul.f32 %v896, %v1008
        %v1025 = vmul.f32 %v897, %v1009
        %v1026 = vmul.f32 %v898, %v1010
        %v1027 = vmul.f32 %v899, %v1011
        %v1028 = vmul.f32 %v900, %v1012
        %v1029 = vmul.f32 %v901, %v1013
        %v1031 = vperm.slane %v425, 0
        %v1033 = vmul.f32 %v1014, %v1031
        %v1034 = vmul.f32 %v1015, %v1031
        %v1035 = vmul.f32 %v1016, %v1031
        %v1036 = vmul.f32 %v1017, %v1031
        %v1037 = vmul.f32 %v1018, %v1031
        %v1038 = vmul.f32 %v1019, %v1031
        %v1039 = vmul.f32 %v1020, %v1031
        %v1040 = vmul.f32 %v1021, %v1031
        %v1041 = vmul.f32 %v1022, %v1031
        %v1042 = vmul.f32 %v1023, %v1031
        %v1043 = vmul.f32 %v1024, %v1031
        %v1044 = vmul.f32 %v1025, %v1031
        %v1045 = vmul.f32 %v1026, %v1031
        %v1046 = vmul.f32 %v1027, %v1031
        %v1047 = vmul.f32 %v1028, %v1031
        %v1048 = vmul.f32 %v1029, %v1031
        %v1050 = vperm.slane %v426, 0
        %v1052 = vadd.f32 %v1033, %v1050
        %v1053 = vadd.f32 %v1034, %v1050
        %v1054 = vadd.f32 %v1035, %v1050
        %v1055 = vadd.f32 %v1036, %v1050
        %v1056 = vadd.f32 %v1037, %v1050
        %v1057 = vadd.f32 %v1038, %v1050
        %v1058 = vadd.f32 %v1039, %v1050
        %v1059 = vadd.f32 %v1040, %v1050
        %v1060 = vadd.f32 %v1041, %v1050
        %v1061 = vadd.f32 %v1042, %v1050
        %v1062 = vadd.f32 %v1043, %v1050
        %v1063 = vadd.f32 %v1044, %v1050
        %v1064 = vadd.f32 %v1045, %v1050
        %v1065 = vadd.f32 %v1046, %v1050
        %v1066 = vadd.f32 %v1047, %v1050
        %v1067 = vadd.f32 %v1048, %v1050
        %v1068 = vadd.f32 %v1052, %v638
        %v1069 = vadd.f32 %v1053, %v639
        %v1070 = vadd.f32 %v1054, %v640
        %v1071 = vadd.f32 %v1055, %v641
        %v1072 = vadd.f32 %v1056, %v642
        %v1073 = vadd.f32 %v1057, %v643
        %v1074 = vadd.f32 %v1058, %v644
        %v1075 = vadd.f32 %v1059, %v645
        %v1076 = vadd.f32 %v1060, %v646
        %v1077 = vadd.f32 %v1061, %v647
        %v1078 = vadd.f32 %v1062, %v648
        %v1079 = vadd.f32 %v1063, %v649
        %v1080 = vadd.f32 %v1064, %v650
        %v1081 = vadd.f32 %v1065, %v651
        %v1082 = vadd.f32 %v1066, %v652
        %v1083 = vadd.f32 %v1067, %v653
        %s1084 = smul.u32 %s433, 16
        %s1085 = scalar_lea.vmem %s314, %s1084
        %1086 = vst.msk [vmem:[%s1085] sm:$0xff] %vm315, %v1068
        %1087 = vst.msk [vmem:[%s1085 + $0x8] sm:$0xff] %vm315, %v1069
        %1088 = vst.msk [vmem:[%s1085 + $0x10] sm:$0xff] %vm315, %v1070
        %1089 = vst.msk [vmem:[%s1085 + $0x18] sm:$0xff] %vm315, %v1071
        %1090 = vst.msk [vmem:[%s1085 + $0x20] sm:$0xff] %vm315, %v1072
        %1091 = vst.msk [vmem:[%s1085 + $0x28] sm:$0xff] %vm315, %v1073
        %1092 = vst.msk [vmem:[%s1085 + $0x30] sm:$0xff] %vm315, %v1074
        %1093 = vst.msk [vmem:[%s1085 + $0x38] sm:$0xff] %vm315, %v1075
        %1094 = vst.msk [vmem:[%s1085 + $0x40] sm:$0xff] %vm315, %v1076
        %1095 = vst.msk [vmem:[%s1085 + $0x48] sm:$0xff] %vm315, %v1077
        %1096 = vst.msk [vmem:[%s1085 + $0x50] sm:$0xff] %vm315, %v1078
        %1097 = vst.msk [vmem:[%s1085 + $0x58] sm:$0xff] %vm315, %v1079
        %1098 = vst.msk [vmem:[%s1085 + $0x60] sm:$0xff] %vm315, %v1080
        %1099 = vst.msk [vmem:[%s1085 + $0x68] sm:$0xff] %vm315, %v1081
        %1100 = vst.msk [vmem:[%s1085 + $0x70] sm:$0xff] %vm315, %v1082
        %1101 = vst.msk [vmem:[%s1085 + $0x78] sm:$0xff] %vm315, %v1083
      $region45: #{tpu_custom_call.1} parent=39 // loop_footer
        %s432 = sadd.s32 1, %s428
      $region46: #{tpu_custom_call.1} parent=39 // loop_footer_branch
        %427 = sbr.rel target = $region42
      $region47: #{tpu_custom_call.1} parent=39 // loop_exit
        _
      %p1102 = scmp.lt.s32.totalorder %s20, 1
      %s1103 = scalar_select %p1102, %s20, 1
      %p1104 = scmp.lt.s32.totalorder %s21, 0
      %s1105 = scalar_select %p1104, %s21, 0
      %s1106 = smul.addr %s1103, 32
      %s1107 = sadd.s32 %s1105, %s1106
      %s1108 = smul.addr %s1107, 8
      %s1109 = scalar_lea.vmem %s5, %s1108
      // Predicated region
      $region48: #{tpu_custom_call.1} parent=39 // pred_check
        %p1110 = pneg %p180
      $region49: #{tpu_custom_call.1} parent=39 // pred_check_branch
        %1112 = sbr.rel (%p1110) target = $region51
      $region50: #{tpu_custom_call.1} parent=39 // pred_region
        _
      $region51: #{tpu_custom_call.1} parent=39 // pred_fallthru
        _
    $region40: #{tpu_custom_call.1} parent=5 // pred_fallthru
      _
    %p1113 = scmp.le.s32.totalorder 2, %s11
    // Predicated region
    $region52: #{tpu_custom_call.1} parent=5 // pred_check
      %p1114 = pneg %p1113
    $region53: #{tpu_custom_call.1} parent=5 // pred_check_branch
      %1116 = sbr.rel (%p1114) target = $region55
    $region54: #{tpu_custom_call.1} parent=5 // pred_region
      %s1117 = ssub.s32 %s11, 2
      // Predicated region
      $region56: #{tpu_custom_call.1} parent=54 // pred_check
        %p1118 = pneg %p186
      $region57: #{tpu_custom_call.1} parent=54 // pred_check_branch
        %1120 = sbr.rel (%p1118) target = $region59
      $region58: #{tpu_custom_call.1} parent=54 // pred_region
        %p1121 = scmp.lt.s32.totalorder %s22, 1
        %s1122 = scalar_select %p1121, %s22, 1
        %p1123 = scmp.lt.s32.totalorder %s23, 0
        %s1124 = scalar_select %p1123, %s23, 0
        %s1125 = smul.addr %s1122, 32
        %s1126 = sadd.s32 %s1124, %s1125
        %s1127 = smul.addr %s1126, 8
        %s1128 = scalar_lea.vmem %s5, %s1127
      $region59: #{tpu_custom_call.1} parent=54 // pred_fallthru
        _
    $region55: #{tpu_custom_call.1} parent=5 // pred_fallthru
      _
  $region6: #{tpu_custom_call.1} parent=0 // loop_footer
    %s15 = sadd.s32 1, %s11
  $region7: #{tpu_custom_call.1} parent=0 // loop_footer_branch
    %10 = sbr.rel target = $region3
  $region8: #{tpu_custom_call.1} parent=0 // loop_exit
    _

</llo_original>
